<compile_context>
chip_gen: v5e
topology: v5e:2x2
jax: 0.10.0
libtpu: 0.0.40
codegen_flags: <defaults>
</compile_context>

<pallas_src>
import jax
import jax.numpy as jnp
from jax.experimental import pallas as pl
from jax.experimental.pallas import tpu as pltpu


def _detector_head_kernel(f_ref, wt_ref, bcls_ref, gamma_ref, beta_ref,
                          expmask_ref, scale_ref,
                          anchors_ref, logits_ref, y_scratch):
    """Refs:
      f_ref:       (N, C, S)  f32   backbone features (C=2048, S=H*W)
      wt_ref:      (17, C)    f32   fused [conv 1x1 ; classifier] weight (transposed)
      bcls_ref:    (1, 2)     f32   classifier bias
      gamma/beta:  (15, 1)    f32   BatchNorm2d affine
      expmask_ref: (15, 1)    f32   1.0 on w/h channels, 0.0 on p/x/y channels
      scale_ref:   (15, 1)    f32   anchor_shape scaling (1.0 elsewhere)
      anchors_ref: (N, 15, S) f32   output
      logits_ref:  (N, 2)     f32   output
      y_scratch:   (N, 17, S) f32   pre-BN fused-matmul results (VMEM, tiny)
    """
    N, C, S = f_ref.shape
    w = wt_ref[...]                                          # (17, C)

    # Fused bbox-conv + per-pixel-classifier matmul per image (N is static,
    # loop is unrolled).  Rows 0:15 = 1x1-conv output, rows 15:17 = classifier
    # terms before spatial pooling.  Conv bias is omitted: training-mode BN
    # subtracts the batch mean right after, so it cancels exactly.
    for n in range(N):
        y_scratch[n] = jnp.dot(w, f_ref[n],
                               preferred_element_type=jnp.float32)  # (17, S)

    yall = y_scratch[...]                                    # (N, 17, S)
    bb = yall[:, 0:15, :]                                    # (N, 15, S)

    # BatchNorm2d, module-default training mode: biased batch statistics over
    # (N, H, W) == axes (0, 2) here.
    cnt = jnp.float32(N * S)
    mu = jnp.sum(jnp.sum(bb, axis=2, keepdims=True),
                 axis=0, keepdims=True) / cnt                # (1, 15, 1)
    d = bb - mu
    var = jnp.sum(jnp.sum(d * d, axis=2, keepdims=True),
                  axis=0, keepdims=True) / cnt               # (1, 15, 1)
    bbn = d * jax.lax.rsqrt(var + 1e-5) * gamma_ref[...] + beta_ref[...]

    # Anchor heads: sigmoid on (p, x, y) channels, exp * anchor_shape on
    # (w, h) channels; exp argument is masked so it can never overflow.
    is_exp = expmask_ref[...] > 0.5                          # (15, 1) -> bcast
    exp_arg = jnp.where(is_exp, bbn, 0.0)
    anchors_ref[...] = jnp.where(is_exp,
                                 jnp.exp(exp_arg) * scale_ref[...],
                                 jax.nn.sigmoid(bbn))

    # Classifier: AdaptiveAvgPool2d((1,1)) + Linear == spatial mean of the
    # fused rows 15:17, plus the classifier bias.
    logits_ref[...] = (jnp.sum(yall[:, 15:17, :], axis=2) / jnp.float32(S)
                       + bcls_ref[...])


def make_params(key, c_in=2048):
    ks = jax.random.split(key, 6)
    params = {
        "wconv": 0.02 * jax.random.normal(ks[0], (c_in, 15), jnp.float32),
        "bconv": 0.02 * jax.random.normal(ks[1], (1, 15), jnp.float32),
        "gamma": 1.0 + 0.1 * jax.random.normal(ks[2], (1, 15), jnp.float32),
        "beta": 0.1 * jax.random.normal(ks[3], (1, 15), jnp.float32),
        "wcls": 0.02 * jax.random.normal(ks[4], (c_in, 2), jnp.float32),
        "bcls": 0.02 * jax.random.normal(ks[5], (1, 2), jnp.float32),
    }
    # Per-channel anchor layout: [pa xa ya wa ha | pb xb yb wb hb | pc xc yc wc hc]
    params["expmask"] = jnp.array([[0, 0, 0, 1, 1] * 3], jnp.float32)
    params["scale"] = jnp.array([[1, 1, 1, 0.5, 2.0,      # anchor A (0.5, 2.0)
                                  1, 1, 1, 1.0, 1.0,      # anchor B (1.0, 1.0)
                                  1, 1, 1, 2.0, 0.5]],    # anchor C (2.0, 0.5)
                                jnp.float32)
    return params


def prepare_head_params(params):
    """One-time (outside the jitted forward) weight fusion / layout prep."""
    wcat_t = jnp.concatenate([params["wconv"], params["wcls"]],
                             axis=1).T.astype(jnp.float32)      # (17, C)
    return {
        "wcat_t": wcat_t,
        "bcls": params["bcls"].astype(jnp.float32),             # (1, 2)
        "gamma": params["gamma"].T,                             # (15, 1)
        "beta": params["beta"].T,
        "expmask": params["expmask"].T,
        "scale": params["scale"].T,
        # bconv intentionally omitted (cancelled by training-mode BatchNorm).
    }


@jax.jit
def best_detector_forward(features_nchw, head):
    """features_nchw: (N, 2048, H, W) f32 -> (anchors (N,15,H,W), logits (N,2))."""
    N, C, H, W = features_nchw.shape
    S = H * W

    # NCHW -> (N, C, S): a free reshape (no transpose, no cast, no extra HBM
    # round trip — the kernel reads the f32 features directly).
    f = features_nchw.reshape(N, C, S)

    anchors_s, logits = pl.pallas_call(
        _detector_head_kernel,
        out_shape=(jax.ShapeDtypeStruct((N, 15, S), jnp.float32),
                   jax.ShapeDtypeStruct((N, 2), jnp.float32)),
        grid=(1,),                                  # single step: whole head in one shot
        in_specs=[
            pl.BlockSpec((N, C, S), lambda i: (0, 0, 0)),   # features
            pl.BlockSpec((17, C), lambda i: (0, 0)),        # fused weight
            pl.BlockSpec((1, 2), lambda i: (0, 0)),         # classifier bias
            pl.BlockSpec((15, 1), lambda i: (0, 0)),        # gamma
            pl.BlockSpec((15, 1), lambda i: (0, 0)),        # beta
            pl.BlockSpec((15, 1), lambda i: (0, 0)),        # exp mask
            pl.BlockSpec((15, 1), lambda i: (0, 0)),        # anchor scale
        ],
        out_specs=(
            pl.BlockSpec((N, 15, S), lambda i: (0, 0, 0)),  # anchors (NCHW-native)
            pl.BlockSpec((N, 2), lambda i: (0, 0)),         # logits
        ),
        scratch_shapes=[pltpu.VMEM((N, 17, S), jnp.float32)],
        compiler_params=pltpu.CompilerParams(
            dimension_semantics=("arbitrary",)),
    )(f, head["wcat_t"], head["bcls"], head["gamma"], head["beta"],
      head["expmask"], head["scale"])

    # Already NCHW: (N, 15, S) -> (N, 15, H, W) is a free reshape.
    return anchors_s.reshape(N, 15, H, W), logits


def _reference_forward(features_nchw, params):
    """Pure-JAX f32 reference with identical math (correctness check)."""
    N, C, H, W = features_nchw.shape
    S = H * W
    f2d = jnp.transpose(features_nchw, (0, 2, 3, 1)).reshape(N * S, C)
    bb = f2d @ params["wconv"] + params["bconv"]
    mu = jnp.mean(bb, axis=0, keepdims=True)
    var = jnp.mean((bb - mu) ** 2, axis=0, keepdims=True)
    bb = (bb - mu) / jnp.sqrt(var + 1e-5) * params["gamma"] + params["beta"]
    anchors2d = jnp.where(params["expmask"] > 0.5,
                          jnp.exp(bb) * params["scale"],
                          jax.nn.sigmoid(bb))
    pooled = f2d.reshape(N, S, C).mean(axis=1)
    logits = pooled @ params["wcls"] + params["bcls"]
    anchors = jnp.transpose(anchors2d.reshape(N, H, W, 15), (0, 3, 1, 2))
    return anchors, logits


if __name__ == "__main__":
    key = jax.random.PRNGKey(0)
    k_feat, k_par = jax.random.split(key)

    # ResNet50 features for a 224x224 input are (N, 2048, 7, 7); batch = 2.
    N, C, H, W = 2, 2048, 7, 7
    features = jax.random.normal(k_feat, (N, C, H, W), jnp.float32)
    params = make_params(k_par, c_in=C)
    head = prepare_head_params(params)   # one-time fusion, outside the jit

    anchors, logits = best_detector_forward(features, head)
    jax.block_until_ready((anchors, logits))

    ref_anchors, ref_logits = _reference_forward(features, params)
    assert anchors.shape == (N, 15, H, W) and logits.shape == (N, 2)
    assert jnp.allclose(anchors, ref_anchors, rtol=2e-2, atol=2e-2)
    assert jnp.allclose(logits, ref_logits, rtol=2e-2, atol=2e-2)

    print("KERNEL_OK")
</pallas_src>

<mosaic_0001>
module attributes {stable_mosaic.version = 11 : i64} {
  func.func @_detector_head_kernel(%arg0: i32, %arg1: memref<2x2048x49xf32, #tpu.memory_space<vmem>>, %arg2: memref<17x2048xf32, #tpu.memory_space<vmem>>, %arg3: memref<1x2xf32, #tpu.memory_space<vmem>>, %arg4: memref<15x1xf32, #tpu.memory_space<vmem>>, %arg5: memref<15x1xf32, #tpu.memory_space<vmem>>, %arg6: memref<15x1xf32, #tpu.memory_space<vmem>>, %arg7: memref<15x1xf32, #tpu.memory_space<vmem>>, %arg8: memref<2x15x49xf32, #tpu.memory_space<vmem>>, %arg9: memref<2x2xf32, #tpu.memory_space<vmem>>, %arg10: memref<2x17x49xf32, #tpu.memory_space<vmem>>) attributes {dimension_semantics = [#tpu.dimension_semantics<arbitrary>], iteration_bounds = array<i64: 1>, scalar_prefetch = 0 : i64, scratch_operands = 1 : i64, tpu.core_type = #tpu.core_type<tc>, window_params = [{pipeline_mode = #tpu.pipeline_mode<synchronous>, transform_indices = @transform_0, window_bounds = array<i64: 2, 2048, 49>}, {pipeline_mode = #tpu.pipeline_mode<synchronous>, transform_indices = @transform_1, window_bounds = array<i64: 17, 2048>}, {pipeline_mode = #tpu.pipeline_mode<synchronous>, transform_indices = @transform_2, window_bounds = array<i64: 1, 2>}, {pipeline_mode = #tpu.pipeline_mode<synchronous>, transform_indices = @transform_3, window_bounds = array<i64: 15, 1>}, {pipeline_mode = #tpu.pipeline_mode<synchronous>, transform_indices = @transform_4, window_bounds = array<i64: 15, 1>}, {pipeline_mode = #tpu.pipeline_mode<synchronous>, transform_indices = @transform_5, window_bounds = array<i64: 15, 1>}, {pipeline_mode = #tpu.pipeline_mode<synchronous>, transform_indices = @transform_6, window_bounds = array<i64: 15, 1>}, {pipeline_mode = #tpu.pipeline_mode<synchronous>, transform_indices = @transform_7, window_bounds = array<i64: 2, 15, 49>}, {pipeline_mode = #tpu.pipeline_mode<synchronous>, transform_indices = @transform_8, window_bounds = array<i64: 2, 2>}]} {
    %c0 = arith.constant 0 : index
    %c0_0 = arith.constant 0 : index
    %0 = vector.load %arg2[%c0, %c0_0] : memref<17x2048xf32, #tpu.memory_space<vmem>>, vector<17x2048xf32>
    %c0_1 = arith.constant 0 : index
    %c0_2 = arith.constant 0 : index
    %c0_3 = arith.constant 0 : index
    %1 = vector.load %arg1[%c0_1, %c0_2, %c0_3] : memref<2x2048x49xf32, #tpu.memory_space<vmem>>, vector<1x2048x49xf32>
    %2 = vector.shape_cast %1 : vector<1x2048x49xf32> to vector<2048x49xf32>
    %cst = arith.constant dense<0.000000e+00> : vector<17x49xf32>
    %3 = tpu.matmul %0, %2, %cst {dimension_numbers = #tpu.dot_dimension_numbers<[1], [0], [0], [1], [0, 0, 1, 1], [], []>} : vector<17x2048xf32>, vector<2048x49xf32>, vector<17x49xf32> -> vector<17x49xf32>
    %c0_4 = arith.constant 0 : index
    %c0_5 = arith.constant 0 : index
    %c0_6 = arith.constant 0 : index
    %4 = vector.load %arg10[%c0_4, %c0_5, %c0_6] : memref<2x17x49xf32, #tpu.memory_space<vmem>>, vector<1x17x49xf32>
    %5 = vector.shape_cast %4 : vector<1x17x49xf32> to vector<17x49xf32>
    %6 = vector.shape_cast %3 : vector<17x49xf32> to vector<1x17x49xf32>
    tpu.vector_store %arg10[%c0_4, %c0_5, %c0_6], %6 {strides = array<i32>} : memref<2x17x49xf32, #tpu.memory_space<vmem>>, vector<1x17x49xf32>,
    %c1 = arith.constant 1 : index
    %c0_7 = arith.constant 0 : index
    %c0_8 = arith.constant 0 : index
    %7 = vector.load %arg1[%c1, %c0_7, %c0_8] : memref<2x2048x49xf32, #tpu.memory_space<vmem>>, vector<1x2048x49xf32>
    %8 = vector.shape_cast %7 : vector<1x2048x49xf32> to vector<2048x49xf32>
    %cst_9 = arith.constant dense<0.000000e+00> : vector<17x49xf32>
    %9 = tpu.matmul %0, %8, %cst_9 {dimension_numbers = #tpu.dot_dimension_numbers<[1], [0], [0], [1], [0, 0, 1, 1], [], []>} : vector<17x2048xf32>, vector<2048x49xf32>, vector<17x49xf32> -> vector<17x49xf32>
    %c1_10 = arith.constant 1 : index
    %c0_11 = arith.constant 0 : index
    %c0_12 = arith.constant 0 : index
    %10 = vector.load %arg10[%c1_10, %c0_11, %c0_12] : memref<2x17x49xf32, #tpu.memory_space<vmem>>, vector<1x17x49xf32>
    %11 = vector.shape_cast %10 : vector<1x17x49xf32> to vector<17x49xf32>
    %12 = vector.shape_cast %9 : vector<17x49xf32> to vector<1x17x49xf32>
    tpu.vector_store %arg10[%c1_10, %c0_11, %c0_12], %12 {strides = array<i32>} : memref<2x17x49xf32, #tpu.memory_space<vmem>>, vector<1x17x49xf32>,
    %c0_13 = arith.constant 0 : index
    %c0_14 = arith.constant 0 : index
    %c0_15 = arith.constant 0 : index
    %13 = vector.load %arg10[%c0_13, %c0_14, %c0_15] : memref<2x17x49xf32, #tpu.memory_space<vmem>>, vector<2x17x49xf32>
    %14 = vector.extract_strided_slice %13 {offsets = [0, 0, 0], sizes = [2, 15, 49], strides = [1, 1, 1]} : vector<2x17x49xf32> to vector<2x15x49xf32>
    %cst_16 = arith.constant dense<0.000000e+00> : vector<2x15xf32>
    %15 = vector.multi_reduction <add>, %14, %cst_16 [2] : vector<2x15x49xf32> to vector<2x15xf32>
    %16 = vector.shape_cast %15 : vector<2x15xf32> to vector<2x15x1xf32>
    %cst_17 = arith.constant dense<0.000000e+00> : vector<15x1xf32>
    %17 = vector.multi_reduction <add>, %16, %cst_17 [0] : vector<2x15x1xf32> to vector<15x1xf32>
    %18 = vector.shape_cast %17 : vector<15x1xf32> to vector<1x15x1xf32>
    %cst_18 = arith.constant 9.800000e+01 : f32
    %19 = vector.broadcast %cst_18 : f32 to vector<1x15x1xf32>
    %20 = arith.divf %18, %19 : vector<1x15x1xf32>
    %21 = vector.broadcast %20 : vector<1x15x1xf32> to vector<2x15x49xf32>
    %22 = arith.subf %14, %21 : vector<2x15x49xf32>
    %23 = arith.mulf %22, %22 : vector<2x15x49xf32>
    %cst_19 = arith.constant dense<0.000000e+00> : vector<2x15xf32>
    %24 = vector.multi_reduction <add>, %23, %cst_19 [2] : vector<2x15x49xf32> to vector<2x15xf32>
    %25 = vector.shape_cast %24 : vector<2x15xf32> to vector<2x15x1xf32>
    %cst_20 = arith.constant dense<0.000000e+00> : vector<15x1xf32>
    %26 = vector.multi_reduction <add>, %25, %cst_20 [0] : vector<2x15x1xf32> to vector<15x1xf32>
    %27 = vector.shape_cast %26 : vector<15x1xf32> to vector<1x15x1xf32>
    %cst_21 = arith.constant 9.800000e+01 : f32
    %28 = vector.broadcast %cst_21 : f32 to vector<1x15x1xf32>
    %29 = arith.divf %27, %28 : vector<1x15x1xf32>
    %cst_22 = arith.constant 9.99999974E-6 : f32
    %30 = vector.broadcast %cst_22 : f32 to vector<1x15x1xf32>
    %31 = arith.addf %29, %30 : vector<1x15x1xf32>
    %32 = math.rsqrt %31 : vector<1x15x1xf32>
    %33 = vector.broadcast %32 : vector<1x15x1xf32> to vector<2x15x49xf32>
    %34 = arith.mulf %22, %33 : vector<2x15x49xf32>
    %c0_23 = arith.constant 0 : index
    %c0_24 = arith.constant 0 : index
    %35 = vector.load %arg4[%c0_23, %c0_24] : memref<15x1xf32, #tpu.memory_space<vmem>>, vector<15x1xf32>
    %36 = vector.shape_cast %35 : vector<15x1xf32> to vector<1x15x1xf32>
    %37 = vector.broadcast %36 : vector<1x15x1xf32> to vector<2x15x49xf32>
    %38 = arith.mulf %34, %37 : vector<2x15x49xf32>
    %c0_25 = arith.constant 0 : index
    %c0_26 = arith.constant 0 : index
    %39 = vector.load %arg5[%c0_25, %c0_26] : memref<15x1xf32, #tpu.memory_space<vmem>>, vector<15x1xf32>
    %40 = vector.shape_cast %39 : vector<15x1xf32> to vector<1x15x1xf32>
    %41 = vector.broadcast %40 : vector<1x15x1xf32> to vector<2x15x49xf32>
    %42 = arith.addf %38, %41 : vector<2x15x49xf32>
    %c0_27 = arith.constant 0 : index
    %c0_28 = arith.constant 0 : index
    %43 = vector.load %arg6[%c0_27, %c0_28] : memref<15x1xf32, #tpu.memory_space<vmem>>, vector<15x1xf32>
    %cst_29 = arith.constant 5.000000e-01 : f32
    %44 = vector.broadcast %cst_29 : f32 to vector<15x1xf32>
    %45 = arith.cmpf ogt, %43, %44 : vector<15x1xf32>
    %cst_30 = arith.constant 0.000000e+00 : f32
    %46 = vector.shape_cast %45 : vector<15x1xi1> to vector<1x15x1xi1>
    %47 = vector.broadcast %46 : vector<1x15x1xi1> to vector<2x15x49xi1>
    %48 = vector.broadcast %cst_30 : f32 to vector<2x15x49xf32>
    %49 = arith.select %47, %42, %48 : vector<2x15x49xi1>, vector<2x15x49xf32>
    %50 = math.exp %49 : vector<2x15x49xf32>
    %c0_31 = arith.constant 0 : index
    %c0_32 = arith.constant 0 : index
    %51 = vector.load %arg7[%c0_31, %c0_32] : memref<15x1xf32, #tpu.memory_space<vmem>>, vector<15x1xf32>
    %52 = vector.shape_cast %51 : vector<15x1xf32> to vector<1x15x1xf32>
    %53 = vector.broadcast %52 : vector<1x15x1xf32> to vector<2x15x49xf32>
    %54 = arith.mulf %50, %53 : vector<2x15x49xf32>
    %55 = arith.negf %42 : vector<2x15x49xf32>
    %56 = math.exp %55 : vector<2x15x49xf32>
    %cst_33 = arith.constant 1.000000e+00 : f32
    %57 = vector.broadcast %cst_33 : f32 to vector<2x15x49xf32>
    %58 = arith.addf %57, %56 : vector<2x15x49xf32>
    %59 = arith.divf %57, %58 : vector<2x15x49xf32>
    %60 = vector.shape_cast %45 : vector<15x1xi1> to vector<1x15x1xi1>
    %61 = vector.broadcast %60 : vector<1x15x1xi1> to vector<2x15x49xi1>
    %62 = arith.select %61, %54, %59 : vector<2x15x49xi1>, vector<2x15x49xf32>
    %c0_34 = arith.constant 0 : index
    %c0_35 = arith.constant 0 : index
    %c0_36 = arith.constant 0 : index
    %63 = vector.load %arg8[%c0_34, %c0_35, %c0_36] : memref<2x15x49xf32, #tpu.memory_space<vmem>>, vector<2x15x49xf32>
    tpu.vector_store %arg8[%c0_34, %c0_35, %c0_36], %62 {strides = array<i32>} : memref<2x15x49xf32, #tpu.memory_space<vmem>>, vector<2x15x49xf32>,
    %64 = vector.extract_strided_slice %13 {offsets = [0, 15, 0], sizes = [2, 2, 49], strides = [1, 1, 1]} : vector<2x17x49xf32> to vector<2x2x49xf32>
    %cst_37 = arith.constant dense<0.000000e+00> : vector<2x2xf32>
    %65 = vector.multi_reduction <add>, %64, %cst_37 [2] : vector<2x2x49xf32> to vector<2x2xf32>
    %cst_38 = arith.constant 4.900000e+01 : f32
    %66 = vector.broadcast %cst_38 : f32 to vector<2x2xf32>
    %67 = arith.divf %65, %66 : vector<2x2xf32>
    %c0_39 = arith.constant 0 : index
    %c0_40 = arith.constant 0 : index
    %68 = vector.load %arg3[%c0_39, %c0_40] : memref<1x2xf32, #tpu.memory_space<vmem>>, vector<1x2xf32>
    %69 = vector.broadcast %68 : vector<1x2xf32> to vector<2x2xf32>
    %70 = arith.addf %67, %69 : vector<2x2xf32>
    %c0_41 = arith.constant 0 : index
    %c0_42 = arith.constant 0 : index
    %71 = vector.load %arg9[%c0_41, %c0_42] : memref<2x2xf32, #tpu.memory_space<vmem>>, vector<2x2xf32>
    tpu.vector_store %arg9[%c0_41, %c0_42], %70 {strides = array<i32>} : memref<2x2xf32, #tpu.memory_space<vmem>>, vector<2x2xf32>,
    return
  }
  func.func @transform_0(%arg0: i32) -> (i32, i32, i32) {
    %c0_i32 = arith.constant 0 : i32
    %c0_i32_0 = arith.constant 0 : i32
    %c0_i32_1 = arith.constant 0 : i32
    %c0_i32_2 = arith.constant 0 : i32
    return %c0_i32, %c0_i32_0, %c0_i32_1 : i32, i32, i32
  }
  func.func @transform_1(%arg0: i32) -> (i32, i32) {
    %c0_i32 = arith.constant 0 : i32
    %c0_i32_0 = arith.constant 0 : i32
    %c0_i32_1 = arith.constant 0 : i32
    return %c0_i32, %c0_i32_0 : i32, i32
  }
  func.func @transform_2(%arg0: i32) -> (i32, i32) {
    %c0_i32 = arith.constant 0 : i32
    %c0_i32_0 = arith.constant 0 : i32
    %c0_i32_1 = arith.constant 0 : i32
    return %c0_i32, %c0_i32_0 : i32, i32
  }
  func.func @transform_3(%arg0: i32) -> (i32, i32) {
    %c0_i32 = arith.constant 0 : i32
    %c0_i32_0 = arith.constant 0 : i32
    %c0_i32_1 = arith.constant 0 : i32
    return %c0_i32, %c0_i32_0 : i32, i32
  }
  func.func @transform_4(%arg0: i32) -> (i32, i32) {
    %c0_i32 = arith.constant 0 : i32
    %c0_i32_0 = arith.constant 0 : i32
    %c0_i32_1 = arith.constant 0 : i32
    return %c0_i32, %c0_i32_0 : i32, i32
  }
  func.func @transform_5(%arg0: i32) -> (i32, i32) {
    %c0_i32 = arith.constant 0 : i32
    %c0_i32_0 = arith.constant 0 : i32
    %c0_i32_1 = arith.constant 0 : i32
    return %c0_i32, %c0_i32_0 : i32, i32
  }
  func.func @transform_6(%arg0: i32) -> (i32, i32) {
    %c0_i32 = arith.constant 0 : i32
    %c0_i32_0 = arith.constant 0 : i32
    %c0_i32_1 = arith.constant 0 : i32
    return %c0_i32, %c0_i32_0 : i32, i32
  }
  func.func @transform_7(%arg0: i32) -> (i32, i32, i32) {
    %c0_i32 = arith.constant 0 : i32
    %c0_i32_0 = arith.constant 0 : i32
    %c0_i32_1 = arith.constant 0 : i32
    %c0_i32_2 = arith.constant 0 : i32
    return %c0_i32, %c0_i32_0, %c0_i32_1 : i32, i32, i32
  }
  func.func @transform_8(%arg0: i32) -> (i32, i32) {
    %c0_i32 = arith.constant 0 : i32
    %c0_i32_0 = arith.constant 0 : i32
    %c0_i32_1 = arith.constant 0 : i32
    return %c0_i32, %c0_i32_0 : i32, i32
  }
}

</mosaic_0001>

<llo_original>
// kernel: best_detector_forward.1
$region0: #{best_detector_forward.1}
  #allocation0 [shape = 'u32[]', space=smem, size = 0x4, offset = 0x4, fixed_abs, tag = 'smem constant byte address 0x4 - core index']
  #allocation1 [shape = 'u32[72,128]{1,0:T(1,128)}', space=vmem, size = 0x9000, scoped, tag = 'internal scratch']
  #allocation2 [shape = 'f32[2,17,49]{2,1,0:T(8,128)}', space=vmem, size = 0x6000, scoped, tag = 'scratch operand']
  %s0 = inlined_call_operand.vmem [shape: f32[2,2048,49], index: 0, kind: input, shape index: {}]
  %s1 = inlined_call_operand.vmem [shape: f32[17,2048], index: 1, kind: input, shape index: {}]
  %s2 = inlined_call_operand.vmem [shape: f32[1,2], index: 2, kind: input, shape index: {}]
  %s3 = inlined_call_operand.vmem [shape: f32[15,1], index: 3, kind: input, shape index: {}]
  %s4 = inlined_call_operand.vmem [shape: f32[15,1], index: 4, kind: input, shape index: {}]
  %s5 = inlined_call_operand.vmem [shape: f32[15,1], index: 5, kind: input, shape index: {}]
  %s6 = inlined_call_operand.vmem [shape: f32[15,1], index: 6, kind: input, shape index: {}]
  %s7 = inlined_call_operand.vmem [shape: f32[2,15,49], index: 7, kind: output, shape index: {0}]
  %s8 = inlined_call_operand.hbm [shape: f32[2,2], index: 8, kind: output, shape index: {1}]
  %9 = xla_tuple %s7, %s8
  %s10 = sld [smem:[#allocation0]]
  $region46: #{best_detector_forward.1} parent=0
    _
  %s12 = ssub.s32 1, %s10
  %s13 = scalar_select 0, %s12, %s10
  $region1: #{best_detector_forward.1} parent=0
    #allocation3 [shape = 'u8[1024]{0}', space=vmem, size = 0x400, scoped, tag = 'output window, operand 1, single buffered']
    #allocation4 [shape = 's32[1]{0}', space=sflag, size = 0x4, scoped, tag = 'scoped memory for best_detector_forward.1']
    %14 = vsyncpa [#allocation4], 0
    // Predicated region
    $region2: #{best_detector_forward.1} parent=1 // pred_check
      _
    $region3: #{best_detector_forward.1} parent=1 // pred_check_branch
      %16 = sbr.rel (0) target = $region5
    $region4: #{best_detector_forward.1} parent=1 // pred_region
      _
    $region5: #{best_detector_forward.1} parent=1 // pred_fallthru
      _
    // Predicated region
    $region6: #{best_detector_forward.1} parent=1 // pred_check
      _
    $region7: #{best_detector_forward.1} parent=1 // pred_check_branch
      %18 = sbr.rel (0) target = $region9
    $region8: #{best_detector_forward.1} parent=1 // pred_region
      _
    $region9: #{best_detector_forward.1} parent=1 // pred_fallthru
      _
    // Predicated region
    $region10: #{best_detector_forward.1} parent=1 // pred_check
      _
    $region11: #{best_detector_forward.1} parent=1 // pred_check_branch
      %20 = sbr.rel (0) target = $region13
    $region12: #{best_detector_forward.1} parent=1 // pred_region
      _
    $region13: #{best_detector_forward.1} parent=1 // pred_fallthru
      _
    // Predicated region
    $region14: #{best_detector_forward.1} parent=1 // pred_check
      _
    $region15: #{best_detector_forward.1} parent=1 // pred_check_branch
      %22 = sbr.rel (0) target = $region17
    $region16: #{best_detector_forward.1} parent=1 // pred_region
      _
    $region17: #{best_detector_forward.1} parent=1 // pred_fallthru
      _
    // Predicated region
    $region18: #{best_detector_forward.1} parent=1 // pred_check
      _
    $region19: #{best_detector_forward.1} parent=1 // pred_check_branch
      %24 = sbr.rel (0) target = $region21
    $region20: #{best_detector_forward.1} parent=1 // pred_region
      _
    $region21: #{best_detector_forward.1} parent=1 // pred_fallthru
      _
    // Predicated region
    $region22: #{best_detector_forward.1} parent=1 // pred_check
      _
    $region23: #{best_detector_forward.1} parent=1 // pred_check_branch
      %26 = sbr.rel (0) target = $region25
    $region24: #{best_detector_forward.1} parent=1 // pred_region
      _
    $region25: #{best_detector_forward.1} parent=1 // pred_fallthru
      _
    // Predicated region
    $region26: #{best_detector_forward.1} parent=1 // pred_check
      _
    $region27: #{best_detector_forward.1} parent=1 // pred_check_branch
      %28 = sbr.rel (0) target = $region29
    $region28: #{best_detector_forward.1} parent=1 // pred_region
      _
    $region29: #{best_detector_forward.1} parent=1 // pred_fallthru
      _
    %v29 = vld [vmem:[%s1] sm:$0xff]
    %v30 = vld [vmem:[%s1 + $0x8] sm:$0xff]
    %v31 = vld [vmem:[%s1 + $0x10] sm:$0xff]
    %v32 = vld [vmem:[%s1 + $0x18] sm:$0xff]
    %v33 = vld [vmem:[%s1 + $0x20] sm:$0xff]
    %v34 = vld [vmem:[%s1 + $0x28] sm:$0xff]
    %v35 = vld [vmem:[%s1 + $0x30] sm:$0xff]
    %v36 = vld [vmem:[%s1 + $0x38] sm:$0xff]
    %v37 = vld [vmem:[%s1 + $0x40] sm:$0xff]
    %v38 = vld [vmem:[%s1 + $0x48] sm:$0xff]
    %v39 = vld [vmem:[%s1 + $0x50] sm:$0xff]
    %v40 = vld [vmem:[%s1 + $0x58] sm:$0xff]
    %v41 = vld [vmem:[%s1 + $0x60] sm:$0xff]
    %v42 = vld [vmem:[%s1 + $0x68] sm:$0xff]
    %v43 = vld [vmem:[%s1 + $0x70] sm:$0xff]
    %v44 = vld [vmem:[%s1 + $0x78] sm:$0xff]
    %v45 = vld [vmem:[%s1 + $0x80] sm:$0xff]
    %v46 = vld [vmem:[%s1 + $0x88] sm:$0xff]
    %v47 = vld [vmem:[%s1 + $0x90] sm:$0xff]
    %v48 = vld [vmem:[%s1 + $0x98] sm:$0xff]
    %v49 = vld [vmem:[%s1 + $0xa0] sm:$0xff]
    %v50 = vld [vmem:[%s1 + $0xa8] sm:$0xff]
    %v51 = vld [vmem:[%s1 + $0xb0] sm:$0xff]
    %v52 = vld [vmem:[%s1 + $0xb8] sm:$0xff]
    %v53 = vld [vmem:[%s1 + $0xc0] sm:$0xff]
    %v54 = vld [vmem:[%s1 + $0xc8] sm:$0xff]
    %v55 = vld [vmem:[%s1 + $0xd0] sm:$0xff]
    %v56 = vld [vmem:[%s1 + $0xd8] sm:$0xff]
    %v57 = vld [vmem:[%s1 + $0xe0] sm:$0xff]
    %v58 = vld [vmem:[%s1 + $0xe8] sm:$0xff]
    %v59 = vld [vmem:[%s1 + $0xf0] sm:$0xff]
    %v60 = vld [vmem:[%s1 + $0xf8] sm:$0xff]
    %v61 = vld [vmem:[%s1 + $0x100] sm:$0x1]
    %v62 = vld [vmem:[%s1 + $0x108] sm:$0x1]
    %v63 = vld [vmem:[%s1 + $0x110] sm:$0x1]
    %v64 = vld [vmem:[%s1 + $0x118] sm:$0x1]
    %v65 = vld [vmem:[%s1 + $0x120] sm:$0x1]
    %v66 = vld [vmem:[%s1 + $0x128] sm:$0x1]
    %v67 = vld [vmem:[%s1 + $0x130] sm:$0x1]
    %v68 = vld [vmem:[%s1 + $0x138] sm:$0x1]
    %v69 = vld [vmem:[%s1 + $0x140] sm:$0x1]
    %v70 = vld [vmem:[%s1 + $0x148] sm:$0x1]
    %v71 = vld [vmem:[%s1 + $0x150] sm:$0x1]
    %v72 = vld [vmem:[%s1 + $0x158] sm:$0x1]
    %v73 = vld [vmem:[%s1 + $0x160] sm:$0x1]
    %v74 = vld [vmem:[%s1 + $0x168] sm:$0x1]
    %v75 = vld [vmem:[%s1 + $0x170] sm:$0x1]
    %v76 = vld [vmem:[%s1 + $0x178] sm:$0x1]
    %v77 = vld [vmem:[%s0] sm:$0xff]
    %v78 = vld [vmem:[%s0 + $0x8] sm:$0xff]
    %v79 = vld [vmem:[%s0 + $0x10] sm:$0xff]
    %v80 = vld [vmem:[%s0 + $0x18] sm:$0xff]
    %v81 = vld [vmem:[%s0 + $0x20] sm:$0xff]
    %v82 = vld [vmem:[%s0 + $0x28] sm:$0xff]
    %v83 = vld [vmem:[%s0 + $0x30] sm:$0xff]
    %v84 = vld [vmem:[%s0 + $0x38] sm:$0xff]
    %v85 = vld [vmem:[%s0 + $0x40] sm:$0xff]
    %v86 = vld [vmem:[%s0 + $0x48] sm:$0xff]
    %v87 = vld [vmem:[%s0 + $0x50] sm:$0xff]
    %v88 = vld [vmem:[%s0 + $0x58] sm:$0xff]
    %v89 = vld [vmem:[%s0 + $0x60] sm:$0xff]
    %v90 = vld [vmem:[%s0 + $0x68] sm:$0xff]
    %v91 = vld [vmem:[%s0 + $0x70] sm:$0xff]
    %v92 = vld [vmem:[%s0 + $0x78] sm:$0xff]
    %v93 = vld [vmem:[%s0 + $0x80] sm:$0xff]
    %v94 = vld [vmem:[%s0 + $0x88] sm:$0xff]
    %v95 = vld [vmem:[%s0 + $0x90] sm:$0xff]
    %v96 = vld [vmem:[%s0 + $0x98] sm:$0xff]
    %v97 = vld [vmem:[%s0 + $0xa0] sm:$0xff]
    %v98 = vld [vmem:[%s0 + $0xa8] sm:$0xff]
    %v99 = vld [vmem:[%s0 + $0xb0] sm:$0xff]
    %v100 = vld [vmem:[%s0 + $0xb8] sm:$0xff]
    %v101 = vld [vmem:[%s0 + $0xc0] sm:$0xff]
    %v102 = vld [vmem:[%s0 + $0xc8] sm:$0xff]
    %v103 = vld [vmem:[%s0 + $0xd0] sm:$0xff]
    %v104 = vld [vmem:[%s0 + $0xd8] sm:$0xff]
    %v105 = vld [vmem:[%s0 + $0xe0] sm:$0xff]
    %v106 = vld [vmem:[%s0 + $0xe8] sm:$0xff]
    %v107 = vld [vmem:[%s0 + $0xf0] sm:$0xff]
    %v108 = vld [vmem:[%s0 + $0xf8] sm:$0xff]
    %v109 = vld [vmem:[%s0 + $0x100] sm:$0xff]
    %v110 = vld [vmem:[%s0 + $0x108] sm:$0xff]
    %v111 = vld [vmem:[%s0 + $0x110] sm:$0xff]
    %v112 = vld [vmem:[%s0 + $0x118] sm:$0xff]
    %v113 = vld [vmem:[%s0 + $0x120] sm:$0xff]
    %v114 = vld [vmem:[%s0 + $0x128] sm:$0xff]
    %v115 = vld [vmem:[%s0 + $0x130] sm:$0xff]
    %v116 = vld [vmem:[%s0 + $0x138] sm:$0xff]
    %v117 = vld [vmem:[%s0 + $0x140] sm:$0xff]
    %v118 = vld [vmem:[%s0 + $0x148] sm:$0xff]
    %v119 = vld [vmem:[%s0 + $0x150] sm:$0xff]
    %v120 = vld [vmem:[%s0 + $0x158] sm:$0xff]
    %v121 = vld [vmem:[%s0 + $0x160] sm:$0xff]
    %v122 = vld [vmem:[%s0 + $0x168] sm:$0xff]
    %v123 = vld [vmem:[%s0 + $0x170] sm:$0xff]
    %v124 = vld [vmem:[%s0 + $0x178] sm:$0xff]
    %v125 = vld [vmem:[%s0 + $0x180] sm:$0xff]
    %v126 = vld [vmem:[%s0 + $0x188] sm:$0xff]
    %v127 = vld [vmem:[%s0 + $0x190] sm:$0xff]
    %v128 = vld [vmem:[%s0 + $0x198] sm:$0xff]
    %v129 = vld [vmem:[%s0 + $0x1a0] sm:$0xff]
    %v130 = vld [vmem:[%s0 + $0x1a8] sm:$0xff]
    %v131 = vld [vmem:[%s0 + $0x1b0] sm:$0xff]
    %v132 = vld [vmem:[%s0 + $0x1b8] sm:$0xff]
    %v133 = vld [vmem:[%s0 + $0x1c0] sm:$0xff]
    %v134 = vld [vmem:[%s0 + $0x1c8] sm:$0xff]
    %v135 = vld [vmem:[%s0 + $0x1d0] sm:$0xff]
    %v136 = vld [vmem:[%s0 + $0x1d8] sm:$0xff]
    %v137 = vld [vmem:[%s0 + $0x1e0] sm:$0xff]
    %v138 = vld [vmem:[%s0 + $0x1e8] sm:$0xff]
    %v139 = vld [vmem:[%s0 + $0x1f0] sm:$0xff]
    %v140 = vld [vmem:[%s0 + $0x1f8] sm:$0xff]
    %v141 = vld [vmem:[%s0 + $0x200] sm:$0xff]
    %v142 = vld [vmem:[%s0 + $0x208] sm:$0xff]
    %v143 = vld [vmem:[%s0 + $0x210] sm:$0xff]
    %v144 = vld [vmem:[%s0 + $0x218] sm:$0xff]
    %v145 = vld [vmem:[%s0 + $0x220] sm:$0xff]
    %v146 = vld [vmem:[%s0 + $0x228] sm:$0xff]
    %v147 = vld [vmem:[%s0 + $0x230] sm:$0xff]
    %v148 = vld [vmem:[%s0 + $0x238] sm:$0xff]
    %v149 = vld [vmem:[%s0 + $0x240] sm:$0xff]
    %v150 = vld [vmem:[%s0 + $0x248] sm:$0xff]
    %v151 = vld [vmem:[%s0 + $0x250] sm:$0xff]
    %v152 = vld [vmem:[%s0 + $0x258] sm:$0xff]
    %v153 = vld [vmem:[%s0 + $0x260] sm:$0xff]
    %v154 = vld [vmem:[%s0 + $0x268] sm:$0xff]
    %v155 = vld [vmem:[%s0 + $0x270] sm:$0xff]
    %v156 = vld [vmem:[%s0 + $0x278] sm:$0xff]
    %v157 = vld [vmem:[%s0 + $0x280] sm:$0xff]
    %v158 = vld [vmem:[%s0 + $0x288] sm:$0xff]
    %v159 = vld [vmem:[%s0 + $0x290] sm:$0xff]
    %v160 = vld [vmem:[%s0 + $0x298] sm:$0xff]
    %v161 = vld [vmem:[%s0 + $0x2a0] sm:$0xff]
    %v162 = vld [vmem:[%s0 + $0x2a8] sm:$0xff]
    %v163 = vld [vmem:[%s0 + $0x2b0] sm:$0xff]
    %v164 = vld [vmem:[%s0 + $0x2b8] sm:$0xff]
    %v165 = vld [vmem:[%s0 + $0x2c0] sm:$0xff]
    %v166 = vld [vmem:[%s0 + $0x2c8] sm:$0xff]
    %v167 = vld [vmem:[%s0 + $0x2d0] sm:$0xff]
    %v168 = vld [vmem:[%s0 + $0x2d8] sm:$0xff]
    %v169 = vld [vmem:[%s0 + $0x2e0] sm:$0xff]
    %v170 = vld [vmem:[%s0 + $0x2e8] sm:$0xff]
    %v171 = vld [vmem:[%s0 + $0x2f0] sm:$0xff]
    %v172 = vld [vmem:[%s0 + $0x2f8] sm:$0xff]
    %v173 = vld [vmem:[%s0 + $0x300] sm:$0xff]
    %v174 = vld [vmem:[%s0 + $0x308] sm:$0xff]
    %v175 = vld [vmem:[%s0 + $0x310] sm:$0xff]
    %v176 = vld [vmem:[%s0 + $0x318] sm:$0xff]
    %v177 = vld [vmem:[%s0 + $0x320] sm:$0xff]
    %v178 = vld [vmem:[%s0 + $0x328] sm:$0xff]
    %v179 = vld [vmem:[%s0 + $0x330] sm:$0xff]
    %v180 = vld [vmem:[%s0 + $0x338] sm:$0xff]
    %v181 = vld [vmem:[%s0 + $0x340] sm:$0xff]
    %v182 = vld [vmem:[%s0 + $0x348] sm:$0xff]
    %v183 = vld [vmem:[%s0 + $0x350] sm:$0xff]
    %v184 = vld [vmem:[%s0 + $0x358] sm:$0xff]
    %v185 = vld [vmem:[%s0 + $0x360] sm:$0xff]
    %v186 = vld [vmem:[%s0 + $0x368] sm:$0xff]
    %v187 = vld [vmem:[%s0 + $0x370] sm:$0xff]
    %v188 = vld [vmem:[%s0 + $0x378] sm:$0xff]
    %v189 = vld [vmem:[%s0 + $0x380] sm:$0xff]
    %v190 = vld [vmem:[%s0 + $0x388] sm:$0xff]
    %v191 = vld [vmem:[%s0 + $0x390] sm:$0xff]
    %v192 = vld [vmem:[%s0 + $0x398] sm:$0xff]
    %v193 = vld [vmem:[%s0 + $0x3a0] sm:$0xff]
    %v194 = vld [vmem:[%s0 + $0x3a8] sm:$0xff]
    %v195 = vld [vmem:[%s0 + $0x3b0] sm:$0xff]
    %v196 = vld [vmem:[%s0 + $0x3b8] sm:$0xff]
    %v197 = vld [vmem:[%s0 + $0x3c0] sm:$0xff]
    %v198 = vld [vmem:[%s0 + $0x3c8] sm:$0xff]
    %v199 = vld [vmem:[%s0 + $0x3d0] sm:$0xff]
    %v200 = vld [vmem:[%s0 + $0x3d8] sm:$0xff]
    %v201 = vld [vmem:[%s0 + $0x3e0] sm:$0xff]
    %v202 = vld [vmem:[%s0 + $0x3e8] sm:$0xff]
    %v203 = vld [vmem:[%s0 + $0x3f0] sm:$0xff]
    %v204 = vld [vmem:[%s0 + $0x3f8] sm:$0xff]
    %v205 = vld [vmem:[%s0 + $0x400] sm:$0xff]
    %v206 = vld [vmem:[%s0 + $0x408] sm:$0xff]
    %v207 = vld [vmem:[%s0 + $0x410] sm:$0xff]
    %v208 = vld [vmem:[%s0 + $0x418] sm:$0xff]
    %v209 = vld [vmem:[%s0 + $0x420] sm:$0xff]
    %v210 = vld [vmem:[%s0 + $0x428] sm:$0xff]
    %v211 = vld [vmem:[%s0 + $0x430] sm:$0xff]
    %v212 = vld [vmem:[%s0 + $0x438] sm:$0xff]
    %v213 = vld [vmem:[%s0 + $0x440] sm:$0xff]
    %v214 = vld [vmem:[%s0 + $0x448] sm:$0xff]
    %v215 = vld [vmem:[%s0 + $0x450] sm:$0xff]
    %v216 = vld [vmem:[%s0 + $0x458] sm:$0xff]
    %v217 = vld [vmem:[%s0 + $0x460] sm:$0xff]
    %v218 = vld [vmem:[%s0 + $0x468] sm:$0xff]
    %v219 = vld [vmem:[%s0 + $0x470] sm:$0xff]
    %v220 = vld [vmem:[%s0 + $0x478] sm:$0xff]
    %v221 = vld [vmem:[%s0 + $0x480] sm:$0xff]
    %v222 = vld [vmem:[%s0 + $0x488] sm:$0xff]
    %v223 = vld [vmem:[%s0 + $0x490] sm:$0xff]
    %v224 = vld [vmem:[%s0 + $0x498] sm:$0xff]
    %v225 = vld [vmem:[%s0 + $0x4a0] sm:$0xff]
    %v226 = vld [vmem:[%s0 + $0x4a8] sm:$0xff]
    %v227 = vld [vmem:[%s0 + $0x4b0] sm:$0xff]
    %v228 = vld [vmem:[%s0 + $0x4b8] sm:$0xff]
    %v229 = vld [vmem:[%s0 + $0x4c0] sm:$0xff]
    %v230 = vld [vmem:[%s0 + $0x4c8] sm:$0xff]
    %v231 = vld [vmem:[%s0 + $0x4d0] sm:$0xff]
    %v232 = vld [vmem:[%s0 + $0x4d8] sm:$0xff]
    %v233 = vld [vmem:[%s0 + $0x4e0] sm:$0xff]
    %v234 = vld [vmem:[%s0 + $0x4e8] sm:$0xff]
    %v235 = vld [vmem:[%s0 + $0x4f0] sm:$0xff]
    %v236 = vld [vmem:[%s0 + $0x4f8] sm:$0xff]
    %v237 = vld [vmem:[%s0 + $0x500] sm:$0xff]
    %v238 = vld [vmem:[%s0 + $0x508] sm:$0xff]
    %v239 = vld [vmem:[%s0 + $0x510] sm:$0xff]
    %v240 = vld [vmem:[%s0 + $0x518] sm:$0xff]
    %v241 = vld [vmem:[%s0 + $0x520] sm:$0xff]
    %v242 = vld [vmem:[%s0 + $0x528] sm:$0xff]
    %v243 = vld [vmem:[%s0 + $0x530] sm:$0xff]
    %v244 = vld [vmem:[%s0 + $0x538] sm:$0xff]
    %v245 = vld [vmem:[%s0 + $0x540] sm:$0xff]
    %v246 = vld [vmem:[%s0 + $0x548] sm:$0xff]
    %v247 = vld [vmem:[%s0 + $0x550] sm:$0xff]
    %v248 = vld [vmem:[%s0 + $0x558] sm:$0xff]
    %v249 = vld [vmem:[%s0 + $0x560] sm:$0xff]
    %v250 = vld [vmem:[%s0 + $0x568] sm:$0xff]
    %v251 = vld [vmem:[%s0 + $0x570] sm:$0xff]
    %v252 = vld [vmem:[%s0 + $0x578] sm:$0xff]
    %v253 = vld [vmem:[%s0 + $0x580] sm:$0xff]
    %v254 = vld [vmem:[%s0 + $0x588] sm:$0xff]
    %v255 = vld [vmem:[%s0 + $0x590] sm:$0xff]
    %v256 = vld [vmem:[%s0 + $0x598] sm:$0xff]
    %v257 = vld [vmem:[%s0 + $0x5a0] sm:$0xff]
    %v258 = vld [vmem:[%s0 + $0x5a8] sm:$0xff]
    %v259 = vld [vmem:[%s0 + $0x5b0] sm:$0xff]
    %v260 = vld [vmem:[%s0 + $0x5b8] sm:$0xff]
    %v261 = vld [vmem:[%s0 + $0x5c0] sm:$0xff]
    %v262 = vld [vmem:[%s0 + $0x5c8] sm:$0xff]
    %v263 = vld [vmem:[%s0 + $0x5d0] sm:$0xff]
    %v264 = vld [vmem:[%s0 + $0x5d8] sm:$0xff]
    %v265 = vld [vmem:[%s0 + $0x5e0] sm:$0xff]
    %v266 = vld [vmem:[%s0 + $0x5e8] sm:$0xff]
    %v267 = vld [vmem:[%s0 + $0x5f0] sm:$0xff]
    %v268 = vld [vmem:[%s0 + $0x5f8] sm:$0xff]
    %v269 = vld [vmem:[%s0 + $0x600] sm:$0xff]
    %v270 = vld [vmem:[%s0 + $0x608] sm:$0xff]
    %v271 = vld [vmem:[%s0 + $0x610] sm:$0xff]
    %v272 = vld [vmem:[%s0 + $0x618] sm:$0xff]
    %v273 = vld [vmem:[%s0 + $0x620] sm:$0xff]
    %v274 = vld [vmem:[%s0 + $0x628] sm:$0xff]
    %v275 = vld [vmem:[%s0 + $0x630] sm:$0xff]
    %v276 = vld [vmem:[%s0 + $0x638] sm:$0xff]
    %v277 = vld [vmem:[%s0 + $0x640] sm:$0xff]
    %v278 = vld [vmem:[%s0 + $0x648] sm:$0xff]
    %v279 = vld [vmem:[%s0 + $0x650] sm:$0xff]
    %v280 = vld [vmem:[%s0 + $0x658] sm:$0xff]
    %v281 = vld [vmem:[%s0 + $0x660] sm:$0xff]
    %v282 = vld [vmem:[%s0 + $0x668] sm:$0xff]
    %v283 = vld [vmem:[%s0 + $0x670] sm:$0xff]
    %v284 = vld [vmem:[%s0 + $0x678] sm:$0xff]
    %v285 = vld [vmem:[%s0 + $0x680] sm:$0xff]
    %v286 = vld [vmem:[%s0 + $0x688] sm:$0xff]
    %v287 = vld [vmem:[%s0 + $0x690] sm:$0xff]
    %v288 = vld [vmem:[%s0 + $0x698] sm:$0xff]
    %v289 = vld [vmem:[%s0 + $0x6a0] sm:$0xff]
    %v290 = vld [vmem:[%s0 + $0x6a8] sm:$0xff]
    %v291 = vld [vmem:[%s0 + $0x6b0] sm:$0xff]
    %v292 = vld [vmem:[%s0 + $0x6b8] sm:$0xff]
    %v293 = vld [vmem:[%s0 + $0x6c0] sm:$0xff]
    %v294 = vld [vmem:[%s0 + $0x6c8] sm:$0xff]
    %v295 = vld [vmem:[%s0 + $0x6d0] sm:$0xff]
    %v296 = vld [vmem:[%s0 + $0x6d8] sm:$0xff]
    %v297 = vld [vmem:[%s0 + $0x6e0] sm:$0xff]
    %v298 = vld [vmem:[%s0 + $0x6e8] sm:$0xff]
    %v299 = vld [vmem:[%s0 + $0x6f0] sm:$0xff]
    %v300 = vld [vmem:[%s0 + $0x6f8] sm:$0xff]
    %v301 = vld [vmem:[%s0 + $0x700] sm:$0xff]
    %v302 = vld [vmem:[%s0 + $0x708] sm:$0xff]
    %v303 = vld [vmem:[%s0 + $0x710] sm:$0xff]
    %v304 = vld [vmem:[%s0 + $0x718] sm:$0xff]
    %v305 = vld [vmem:[%s0 + $0x720] sm:$0xff]
    %v306 = vld [vmem:[%s0 + $0x728] sm:$0xff]
    %v307 = vld [vmem:[%s0 + $0x730] sm:$0xff]
    %v308 = vld [vmem:[%s0 + $0x738] sm:$0xff]
    %v309 = vld [vmem:[%s0 + $0x740] sm:$0xff]
    %v310 = vld [vmem:[%s0 + $0x748] sm:$0xff]
    %v311 = vld [vmem:[%s0 + $0x750] sm:$0xff]
    %v312 = vld [vmem:[%s0 + $0x758] sm:$0xff]
    %v313 = vld [vmem:[%s0 + $0x760] sm:$0xff]
    %v314 = vld [vmem:[%s0 + $0x768] sm:$0xff]
    %v315 = vld [vmem:[%s0 + $0x770] sm:$0xff]
    %v316 = vld [vmem:[%s0 + $0x778] sm:$0xff]
    %v317 = vld [vmem:[%s0 + $0x780] sm:$0xff]
    %v318 = vld [vmem:[%s0 + $0x788] sm:$0xff]
    %v319 = vld [vmem:[%s0 + $0x790] sm:$0xff]
    %v320 = vld [vmem:[%s0 + $0x798] sm:$0xff]
    %v321 = vld [vmem:[%s0 + $0x7a0] sm:$0xff]
    %v322 = vld [vmem:[%s0 + $0x7a8] sm:$0xff]
    %v323 = vld [vmem:[%s0 + $0x7b0] sm:$0xff]
    %v324 = vld [vmem:[%s0 + $0x7b8] sm:$0xff]
    %v325 = vld [vmem:[%s0 + $0x7c0] sm:$0xff]
    %v326 = vld [vmem:[%s0 + $0x7c8] sm:$0xff]
    %v327 = vld [vmem:[%s0 + $0x7d0] sm:$0xff]
    %v328 = vld [vmem:[%s0 + $0x7d8] sm:$0xff]
    %v329 = vld [vmem:[%s0 + $0x7e0] sm:$0xff]
    %v330 = vld [vmem:[%s0 + $0x7e8] sm:$0xff]
    %v331 = vld [vmem:[%s0 + $0x7f0] sm:$0xff]
    %v332 = vld [vmem:[%s0 + $0x7f8] sm:$0xff]
    %333 = vmatpush.msra.mxu0 %v92
    %334 = vmatpush.msra.mxu0 %v91
    %335 = vmatpush.msra.mxu0 %v90
    %336 = vmatpush.msra.mxu0 %v89
    %337 = vmatpush.msra.mxu0 %v88
    %338 = vmatpush.msra.mxu0 %v87
    %339 = vmatpush.msra.mxu0 %v86
    %340 = vmatpush.msra.mxu0 %v85
    %341 = vmatpush.msra.mxu0 %v84
    %342 = vmatpush.msra.mxu0 %v83
    %343 = vmatpush.msra.mxu0 %v82
    %344 = vmatpush.msra.mxu0 %v81
    %345 = vmatpush.msra.mxu0 %v80
    %346 = vmatpush.msra.mxu0 %v79
    %347 = vmatpush.msra.mxu0 %v78
    %348 = vmatpush.msra.mxu0 %v77
    %349 = vmatmul.f32.gmra.mxu0 %v29
    %v350 = vpop.f32.mrf.mxu0
    %v351 = vadd.f32 0.0, %v350
    %352 = vmatmul.f32.gmra.mxu0 %v45
    %v353 = vpop.f32.mrf.mxu0
    %v354 = vadd.f32 0.0, %v353
    %355 = vmatmul.f32.gmra.mxu0 %v61
    %v356 = vpop.f32.mrf.mxu0
    %v357 = vadd.f32 0.0, %v356
    %358 = vdwg.mxu0
    %359 = vmatpush.msra.mxu0 %v108
    %360 = vmatpush.msra.mxu0 %v107
    %361 = vmatpush.msra.mxu0 %v106
    %362 = vmatpush.msra.mxu0 %v105
    %363 = vmatpush.msra.mxu0 %v104
    %364 = vmatpush.msra.mxu0 %v103
    %365 = vmatpush.msra.mxu0 %v102
    %366 = vmatpush.msra.mxu0 %v101
    %367 = vmatpush.msra.mxu0 %v100
    %368 = vmatpush.msra.mxu0 %v99
    %369 = vmatpush.msra.mxu0 %v98
    %370 = vmatpush.msra.mxu0 %v97
    %371 = vmatpush.msra.mxu0 %v96
    %372 = vmatpush.msra.mxu0 %v95
    %373 = vmatpush.msra.mxu0 %v94
    %374 = vmatpush.msra.mxu0 %v93
    %375 = vmatmul.f32.gmra.mxu0 %v30
    %v376 = vpop.f32.mrf.mxu0
    %v377 = vadd.f32 %v351, %v376
    %378 = vmatmul.f32.gmra.mxu0 %v46
    %v379 = vpop.f32.mrf.mxu0
    %v380 = vadd.f32 %v354, %v379
    %381 = vmatmul.f32.gmra.mxu0 %v62
    %v382 = vpop.f32.mrf.mxu0
    %v383 = vadd.f32 %v357, %v382
    %384 = vdwg.mxu0
    %385 = vmatpush.msra.mxu0 %v124
    %386 = vmatpush.msra.mxu0 %v123
    %387 = vmatpush.msra.mxu0 %v122
    %388 = vmatpush.msra.mxu0 %v121
    %389 = vmatpush.msra.mxu0 %v120
    %390 = vmatpush.msra.mxu0 %v119
    %391 = vmatpush.msra.mxu0 %v118
    %392 = vmatpush.msra.mxu0 %v117
    %393 = vmatpush.msra.mxu0 %v116
    %394 = vmatpush.msra.mxu0 %v115
    %395 = vmatpush.msra.mxu0 %v114
    %396 = vmatpush.msra.mxu0 %v113
    %397 = vmatpush.msra.mxu0 %v112
    %398 = vmatpush.msra.mxu0 %v111
    %399 = vmatpush.msra.mxu0 %v110
    %400 = vmatpush.msra.mxu0 %v109
    %401 = vmatmul.f32.gmra.mxu0 %v31
    %v402 = vpop.f32.mrf.mxu0
    %v403 = vadd.f32 %v377, %v402
    %404 = vmatmul.f32.gmra.mxu0 %v47
    %v405 = vpop.f32.mrf.mxu0
    %v406 = vadd.f32 %v380, %v405
    %407 = vmatmul.f32.gmra.mxu0 %v63
    %v408 = vpop.f32.mrf.mxu0
    %v409 = vadd.f32 %v383, %v408
    %410 = vdwg.mxu0
    %411 = vmatpush.msra.mxu0 %v140
    %412 = vmatpush.msra.mxu0 %v139
    %413 = vmatpush.msra.mxu0 %v138
    %414 = vmatpush.msra.mxu0 %v137
    %415 = vmatpush.msra.mxu0 %v136
    %416 = vmatpush.msra.mxu0 %v135
    %417 = vmatpush.msra.mxu0 %v134
    %418 = vmatpush.msra.mxu0 %v133
    %419 = vmatpush.msra.mxu0 %v132
    %420 = vmatpush.msra.mxu0 %v131
    %421 = vmatpush.msra.mxu0 %v130
    %422 = vmatpush.msra.mxu0 %v129
    %423 = vmatpush.msra.mxu0 %v128
    %424 = vmatpush.msra.mxu0 %v127
    %425 = vmatpush.msra.mxu0 %v126
    %426 = vmatpush.msra.mxu0 %v125
    %427 = vmatmul.f32.gmra.mxu0 %v32
    %v428 = vpop.f32.mrf.mxu0
    %v429 = vadd.f32 %v403, %v428
    %430 = vmatmul.f32.gmra.mxu0 %v48
    %v431 = vpop.f32.mrf.mxu0
    %v432 = vadd.f32 %v406, %v431
    %433 = vmatmul.f32.gmra.mxu0 %v64
    %v434 = vpop.f32.mrf.mxu0
    %v435 = vadd.f32 %v409, %v434
    %436 = vdwg.mxu0
    %437 = vmatpush.msra.mxu0 %v156
    %438 = vmatpush.msra.mxu0 %v155
    %439 = vmatpush.msra.mxu0 %v154
    %440 = vmatpush.msra.mxu0 %v153
    %441 = vmatpush.msra.mxu0 %v152
    %442 = vmatpush.msra.mxu0 %v151
    %443 = vmatpush.msra.mxu0 %v150
    %444 = vmatpush.msra.mxu0 %v149
    %445 = vmatpush.msra.mxu0 %v148
    %446 = vmatpush.msra.mxu0 %v147
    %447 = vmatpush.msra.mxu0 %v146
    %448 = vmatpush.msra.mxu0 %v145
    %449 = vmatpush.msra.mxu0 %v144
    %450 = vmatpush.msra.mxu0 %v143
    %451 = vmatpush.msra.mxu0 %v142
    %452 = vmatpush.msra.mxu0 %v141
    %453 = vmatmul.f32.gmra.mxu0 %v33
    %v454 = vpop.f32.mrf.mxu0
    %v455 = vadd.f32 %v429, %v454
    %456 = vmatmul.f32.gmra.mxu0 %v49
    %v457 = vpop.f32.mrf.mxu0
    %v458 = vadd.f32 %v432, %v457
    %459 = vmatmul.f32.gmra.mxu0 %v65
    %v460 = vpop.f32.mrf.mxu0
    %v461 = vadd.f32 %v435, %v460
    %462 = vdwg.mxu0
    %463 = vmatpush.msra.mxu0 %v172
    %464 = vmatpush.msra.mxu0 %v171
    %465 = vmatpush.msra.mxu0 %v170
    %466 = vmatpush.msra.mxu0 %v169
    %467 = vmatpush.msra.mxu0 %v168
    %468 = vmatpush.msra.mxu0 %v167
    %469 = vmatpush.msra.mxu0 %v166
    %470 = vmatpush.msra.mxu0 %v165
    %471 = vmatpush.msra.mxu0 %v164
    %472 = vmatpush.msra.mxu0 %v163
    %473 = vmatpush.msra.mxu0 %v162
    %474 = vmatpush.msra.mxu0 %v161
    %475 = vmatpush.msra.mxu0 %v160
    %476 = vmatpush.msra.mxu0 %v159
    %477 = vmatpush.msra.mxu0 %v158
    %478 = vmatpush.msra.mxu0 %v157
    %479 = vmatmul.f32.gmra.mxu0 %v34
    %v480 = vpop.f32.mrf.mxu0
    %v481 = vadd.f32 %v455, %v480
    %482 = vmatmul.f32.gmra.mxu0 %v50
    %v483 = vpop.f32.mrf.mxu0
    %v484 = vadd.f32 %v458, %v483
    %485 = vmatmul.f32.gmra.mxu0 %v66
    %v486 = vpop.f32.mrf.mxu0
    %v487 = vadd.f32 %v461, %v486
    %488 = vdwg.mxu0
    %489 = vmatpush.msra.mxu0 %v188
    %490 = vmatpush.msra.mxu0 %v187
    %491 = vmatpush.msra.mxu0 %v186
    %492 = vmatpush.msra.mxu0 %v185
    %493 = vmatpush.msra.mxu0 %v184
    %494 = vmatpush.msra.mxu0 %v183
    %495 = vmatpush.msra.mxu0 %v182
    %496 = vmatpush.msra.mxu0 %v181
    %497 = vmatpush.msra.mxu0 %v180
    %498 = vmatpush.msra.mxu0 %v179
    %499 = vmatpush.msra.mxu0 %v178
    %500 = vmatpush.msra.mxu0 %v177
    %501 = vmatpush.msra.mxu0 %v176
    %502 = vmatpush.msra.mxu0 %v175
    %503 = vmatpush.msra.mxu0 %v174
    %504 = vmatpush.msra.mxu0 %v173
    %505 = vmatmul.f32.gmra.mxu0 %v35
    %v506 = vpop.f32.mrf.mxu0
    %v507 = vadd.f32 %v481, %v506
    %508 = vmatmul.f32.gmra.mxu0 %v51
    %v509 = vpop.f32.mrf.mxu0
    %v510 = vadd.f32 %v484, %v509
    %511 = vmatmul.f32.gmra.mxu0 %v67
    %v512 = vpop.f32.mrf.mxu0
    %v513 = vadd.f32 %v487, %v512
    %514 = vdwg.mxu0
    %515 = vmatpush.msra.mxu0 %v204
    %516 = vmatpush.msra.mxu0 %v203
    %517 = vmatpush.msra.mxu0 %v202
    %518 = vmatpush.msra.mxu0 %v201
    %519 = vmatpush.msra.mxu0 %v200
    %520 = vmatpush.msra.mxu0 %v199
    %521 = vmatpush.msra.mxu0 %v198
    %522 = vmatpush.msra.mxu0 %v197
    %523 = vmatpush.msra.mxu0 %v196
    %524 = vmatpush.msra.mxu0 %v195
    %525 = vmatpush.msra.mxu0 %v194
    %526 = vmatpush.msra.mxu0 %v193
    %527 = vmatpush.msra.mxu0 %v192
    %528 = vmatpush.msra.mxu0 %v191
    %529 = vmatpush.msra.mxu0 %v190
    %530 = vmatpush.msra.mxu0 %v189
    %531 = vmatmul.f32.gmra.mxu0 %v36
    %v532 = vpop.f32.mrf.mxu0
    %v533 = vadd.f32 %v507, %v532
    %534 = vmatmul.f32.gmra.mxu0 %v52
    %v535 = vpop.f32.mrf.mxu0
    %v536 = vadd.f32 %v510, %v535
    %537 = vmatmul.f32.gmra.mxu0 %v68
    %v538 = vpop.f32.mrf.mxu0
    %v539 = vadd.f32 %v513, %v538
    %540 = vdwg.mxu0
    %541 = vmatpush.msra.mxu0 %v220
    %542 = vmatpush.msra.mxu0 %v219
    %543 = vmatpush.msra.mxu0 %v218
    %544 = vmatpush.msra.mxu0 %v217
    %545 = vmatpush.msra.mxu0 %v216
    %546 = vmatpush.msra.mxu0 %v215
    %547 = vmatpush.msra.mxu0 %v214
    %548 = vmatpush.msra.mxu0 %v213
    %549 = vmatpush.msra.mxu0 %v212
    %550 = vmatpush.msra.mxu0 %v211
    %551 = vmatpush.msra.mxu0 %v210
    %552 = vmatpush.msra.mxu0 %v209
    %553 = vmatpush.msra.mxu0 %v208
    %554 = vmatpush.msra.mxu0 %v207
    %555 = vmatpush.msra.mxu0 %v206
    %556 = vmatpush.msra.mxu0 %v205
    %557 = vmatmul.f32.gmra.mxu0 %v37
    %v558 = vpop.f32.mrf.mxu0
    %v559 = vadd.f32 %v533, %v558
    %560 = vmatmul.f32.gmra.mxu0 %v53
    %v561 = vpop.f32.mrf.mxu0
    %v562 = vadd.f32 %v536, %v561
    %563 = vmatmul.f32.gmra.mxu0 %v69
    %v564 = vpop.f32.mrf.mxu0
    %v565 = vadd.f32 %v539, %v564
    %566 = vdwg.mxu0
    %567 = vmatpush.msra.mxu0 %v236
    %568 = vmatpush.msra.mxu0 %v235
    %569 = vmatpush.msra.mxu0 %v234
    %570 = vmatpush.msra.mxu0 %v233
    %571 = vmatpush.msra.mxu0 %v232
    %572 = vmatpush.msra.mxu0 %v231
    %573 = vmatpush.msra.mxu0 %v230
    %574 = vmatpush.msra.mxu0 %v229
    %575 = vmatpush.msra.mxu0 %v228
    %576 = vmatpush.msra.mxu0 %v227
    %577 = vmatpush.msra.mxu0 %v226
    %578 = vmatpush.msra.mxu0 %v225
    %579 = vmatpush.msra.mxu0 %v224
    %580 = vmatpush.msra.mxu0 %v223
    %581 = vmatpush.msra.mxu0 %v222
    %582 = vmatpush.msra.mxu0 %v221
    %583 = vmatmul.f32.gmra.mxu0 %v38
    %v584 = vpop.f32.mrf.mxu0
    %v585 = vadd.f32 %v559, %v584
    %586 = vmatmul.f32.gmra.mxu0 %v54
    %v587 = vpop.f32.mrf.mxu0
    %v588 = vadd.f32 %v562, %v587
    %589 = vmatmul.f32.gmra.mxu0 %v70
    %v590 = vpop.f32.mrf.mxu0
    %v591 = vadd.f32 %v565, %v590
    %592 = vdwg.mxu0
    %593 = vmatpush.msra.mxu0 %v252
    %594 = vmatpush.msra.mxu0 %v251
    %595 = vmatpush.msra.mxu0 %v250
    %596 = vmatpush.msra.mxu0 %v249
    %597 = vmatpush.msra.mxu0 %v248
    %598 = vmatpush.msra.mxu0 %v247
    %599 = vmatpush.msra.mxu0 %v246
    %600 = vmatpush.msra.mxu0 %v245
    %601 = vmatpush.msra.mxu0 %v244
    %602 = vmatpush.msra.mxu0 %v243
    %603 = vmatpush.msra.mxu0 %v242
    %604 = vmatpush.msra.mxu0 %v241
    %605 = vmatpush.msra.mxu0 %v240
    %606 = vmatpush.msra.mxu0 %v239
    %607 = vmatpush.msra.mxu0 %v238
    %608 = vmatpush.msra.mxu0 %v237
    %609 = vmatmul.f32.gmra.mxu0 %v39
    %v610 = vpop.f32.mrf.mxu0
    %v611 = vadd.f32 %v585, %v610
    %612 = vmatmul.f32.gmra.mxu0 %v55
    %v613 = vpop.f32.mrf.mxu0
    %v614 = vadd.f32 %v588, %v613
    %615 = vmatmul.f32.gmra.mxu0 %v71
    %v616 = vpop.f32.mrf.mxu0
    %v617 = vadd.f32 %v591, %v616
    %618 = vdwg.mxu0
    %619 = vmatpush.msra.mxu0 %v268
    %620 = vmatpush.msra.mxu0 %v267
    %621 = vmatpush.msra.mxu0 %v266
    %622 = vmatpush.msra.mxu0 %v265
    %623 = vmatpush.msra.mxu0 %v264
    %624 = vmatpush.msra.mxu0 %v263
    %625 = vmatpush.msra.mxu0 %v262
    %626 = vmatpush.msra.mxu0 %v261
    %627 = vmatpush.msra.mxu0 %v260
    %628 = vmatpush.msra.mxu0 %v259
    %629 = vmatpush.msra.mxu0 %v258
    %630 = vmatpush.msra.mxu0 %v257
    %631 = vmatpush.msra.mxu0 %v256
    %632 = vmatpush.msra.mxu0 %v255
    %633 = vmatpush.msra.mxu0 %v254
    %634 = vmatpush.msra.mxu0 %v253
    %635 = vmatmul.f32.gmra.mxu0 %v40
    %v636 = vpop.f32.mrf.mxu0
    %v637 = vadd.f32 %v611, %v636
    %638 = vmatmul.f32.gmra.mxu0 %v56
    %v639 = vpop.f32.mrf.mxu0
    %v640 = vadd.f32 %v614, %v639
    %641 = vmatmul.f32.gmra.mxu0 %v72
    %v642 = vpop.f32.mrf.mxu0
    %v643 = vadd.f32 %v617, %v642
    %644 = vdwg.mxu0
    %645 = vmatpush.msra.mxu0 %v284
    %646 = vmatpush.msra.mxu0 %v283
    %647 = vmatpush.msra.mxu0 %v282
    %648 = vmatpush.msra.mxu0 %v281
    %649 = vmatpush.msra.mxu0 %v280
    %650 = vmatpush.msra.mxu0 %v279
    %651 = vmatpush.msra.mxu0 %v278
    %652 = vmatpush.msra.mxu0 %v277
    %653 = vmatpush.msra.mxu0 %v276
    %654 = vmatpush.msra.mxu0 %v275
    %655 = vmatpush.msra.mxu0 %v274
    %656 = vmatpush.msra.mxu0 %v273
    %657 = vmatpush.msra.mxu0 %v272
    %658 = vmatpush.msra.mxu0 %v271
    %659 = vmatpush.msra.mxu0 %v270
    %660 = vmatpush.msra.mxu0 %v269
    %661 = vmatmul.f32.gmra.mxu0 %v41
    %v662 = vpop.f32.mrf.mxu0
    %v663 = vadd.f32 %v637, %v662
    %664 = vmatmul.f32.gmra.mxu0 %v57
    %v665 = vpop.f32.mrf.mxu0
    %v666 = vadd.f32 %v640, %v665
    %667 = vmatmul.f32.gmra.mxu0 %v73
    %v668 = vpop.f32.mrf.mxu0
    %v669 = vadd.f32 %v643, %v668
    %670 = vdwg.mxu0
    %671 = vmatpush.msra.mxu0 %v300
    %672 = vmatpush.msra.mxu0 %v299
    %673 = vmatpush.msra.mxu0 %v298
    %674 = vmatpush.msra.mxu0 %v297
    %675 = vmatpush.msra.mxu0 %v296
    %676 = vmatpush.msra.mxu0 %v295
    %677 = vmatpush.msra.mxu0 %v294
    %678 = vmatpush.msra.mxu0 %v293
    %679 = vmatpush.msra.mxu0 %v292
    %680 = vmatpush.msra.mxu0 %v291
    %681 = vmatpush.msra.mxu0 %v290
    %682 = vmatpush.msra.mxu0 %v289
    %683 = vmatpush.msra.mxu0 %v288
    %684 = vmatpush.msra.mxu0 %v287
    %685 = vmatpush.msra.mxu0 %v286
    %686 = vmatpush.msra.mxu0 %v285
    %687 = vmatmul.f32.gmra.mxu0 %v42
    %v688 = vpop.f32.mrf.mxu0
    %v689 = vadd.f32 %v663, %v688
    %690 = vmatmul.f32.gmra.mxu0 %v58
    %v691 = vpop.f32.mrf.mxu0
    %v692 = vadd.f32 %v666, %v691
    %693 = vmatmul.f32.gmra.mxu0 %v74
    %v694 = vpop.f32.mrf.mxu0
    %v695 = vadd.f32 %v669, %v694
    %696 = vdwg.mxu0
    %697 = vmatpush.msra.mxu0 %v316
    %698 = vmatpush.msra.mxu0 %v315
    %699 = vmatpush.msra.mxu0 %v314
    %700 = vmatpush.msra.mxu0 %v313
    %701 = vmatpush.msra.mxu0 %v312
    %702 = vmatpush.msra.mxu0 %v311
    %703 = vmatpush.msra.mxu0 %v310
    %704 = vmatpush.msra.mxu0 %v309
    %705 = vmatpush.msra.mxu0 %v308
    %706 = vmatpush.msra.mxu0 %v307
    %707 = vmatpush.msra.mxu0 %v306
    %708 = vmatpush.msra.mxu0 %v305
    %709 = vmatpush.msra.mxu0 %v304
    %710 = vmatpush.msra.mxu0 %v303
    %711 = vmatpush.msra.mxu0 %v302
    %712 = vmatpush.msra.mxu0 %v301
    %713 = vmatmul.f32.gmra.mxu0 %v43
    %v714 = vpop.f32.mrf.mxu0
    %v715 = vadd.f32 %v689, %v714
    %716 = vmatmul.f32.gmra.mxu0 %v59
    %v717 = vpop.f32.mrf.mxu0
    %v718 = vadd.f32 %v692, %v717
    %719 = vmatmul.f32.gmra.mxu0 %v75
    %v720 = vpop.f32.mrf.mxu0
    %v721 = vadd.f32 %v695, %v720
    %722 = vdwg.mxu0
    %723 = vmatpush.msra.mxu0 %v332
    %724 = vmatpush.msra.mxu0 %v331
    %725 = vmatpush.msra.mxu0 %v330
    %726 = vmatpush.msra.mxu0 %v329
    %727 = vmatpush.msra.mxu0 %v328
    %728 = vmatpush.msra.mxu0 %v327
    %729 = vmatpush.msra.mxu0 %v326
    %730 = vmatpush.msra.mxu0 %v325
    %731 = vmatpush.msra.mxu0 %v324
    %732 = vmatpush.msra.mxu0 %v323
    %733 = vmatpush.msra.mxu0 %v322
    %734 = vmatpush.msra.mxu0 %v321
    %735 = vmatpush.msra.mxu0 %v320
    %736 = vmatpush.msra.mxu0 %v319
    %737 = vmatpush.msra.mxu0 %v318
    %738 = vmatpush.msra.mxu0 %v317
    %739 = vmatmul.f32.gmra.mxu0 %v44
    %v740 = vpop.f32.mrf.mxu0
    %v741 = vadd.f32 %v715, %v740
    %742 = vmatmul.f32.gmra.mxu0 %v60
    %v743 = vpop.f32.mrf.mxu0
    %v744 = vadd.f32 %v718, %v743
    %745 = vmatmul.f32.gmra.mxu0 %v76
    %v746 = vpop.f32.mrf.mxu0
    %v747 = vadd.f32 %v721, %v746
    %748 = vdwg.mxu0
    %vm749 = vcmask 400384
    %750 = vst.msk [vmem:[#allocation2] sm:$0xff] %vm749, %v741
    %751 = vst.msk [vmem:[#allocation2 + $0x8] sm:$0xff] %vm749, %v744
    %vm752 = vcmask 393216
    %753 = vst.msk [vmem:[#allocation2 + $0x10] sm:$0x1] %vm752, %v747
    %s754 = scalar_lea.vmem %s0, 2048
    %v755 = vld [vmem:[%s754] sm:$0xff]
    %v756 = vld [vmem:[%s754 + $0x8] sm:$0xff]
    %v757 = vld [vmem:[%s754 + $0x10] sm:$0xff]
    %v758 = vld [vmem:[%s754 + $0x18] sm:$0xff]
    %v759 = vld [vmem:[%s754 + $0x20] sm:$0xff]
    %v760 = vld [vmem:[%s754 + $0x28] sm:$0xff]
    %v761 = vld [vmem:[%s754 + $0x30] sm:$0xff]
    %v762 = vld [vmem:[%s754 + $0x38] sm:$0xff]
    %v763 = vld [vmem:[%s754 + $0x40] sm:$0xff]
    %v764 = vld [vmem:[%s754 + $0x48] sm:$0xff]
    %v765 = vld [vmem:[%s754 + $0x50] sm:$0xff]
    %v766 = vld [vmem:[%s754 + $0x58] sm:$0xff]
    %v767 = vld [vmem:[%s754 + $0x60] sm:$0xff]
    %v768 = vld [vmem:[%s754 + $0x68] sm:$0xff]
    %v769 = vld [vmem:[%s754 + $0x70] sm:$0xff]
    %v770 = vld [vmem:[%s754 + $0x78] sm:$0xff]
    %v771 = vld [vmem:[%s754 + $0x80] sm:$0xff]
    %v772 = vld [vmem:[%s754 + $0x88] sm:$0xff]
    %v773 = vld [vmem:[%s754 + $0x90] sm:$0xff]
    %v774 = vld [vmem:[%s754 + $0x98] sm:$0xff]
    %v775 = vld [vmem:[%s754 + $0xa0] sm:$0xff]
    %v776 = vld [vmem:[%s754 + $0xa8] sm:$0xff]
    %v777 = vld [vmem:[%s754 + $0xb0] sm:$0xff]
    %v778 = vld [vmem:[%s754 + $0xb8] sm:$0xff]
    %v779 = vld [vmem:[%s754 + $0xc0] sm:$0xff]
    %v780 = vld [vmem:[%s754 + $0xc8] sm:$0xff]
    %v781 = vld [vmem:[%s754 + $0xd0] sm:$0xff]
    %v782 = vld [vmem:[%s754 + $0xd8] sm:$0xff]
    %v783 = vld [vmem:[%s754 + $0xe0] sm:$0xff]
    %v784 = vld [vmem:[%s754 + $0xe8] sm:$0xff]
    %v785 = vld [vmem:[%s754 + $0xf0] sm:$0xff]
    %v786 = vld [vmem:[%s754 + $0xf8] sm:$0xff]
    %v787 = vld [vmem:[%s754 + $0x100] sm:$0xff]
    %v788 = vld [vmem:[%s754 + $0x108] sm:$0xff]
    %v789 = vld [vmem:[%s754 + $0x110] sm:$0xff]
    %v790 = vld [vmem:[%s754 + $0x118] sm:$0xff]
    %v791 = vld [vmem:[%s754 + $0x120] sm:$0xff]
    %v792 = vld [vmem:[%s754 + $0x128] sm:$0xff]
    %v793 = vld [vmem:[%s754 + $0x130] sm:$0xff]
    %v794 = vld [vmem:[%s754 + $0x138] sm:$0xff]
    %v795 = vld [vmem:[%s754 + $0x140] sm:$0xff]
    %v796 = vld [vmem:[%s754 + $0x148] sm:$0xff]
    %v797 = vld [vmem:[%s754 + $0x150] sm:$0xff]
    %v798 = vld [vmem:[%s754 + $0x158] sm:$0xff]
    %v799 = vld [vmem:[%s754 + $0x160] sm:$0xff]
    %v800 = vld [vmem:[%s754 + $0x168] sm:$0xff]
    %v801 = vld [vmem:[%s754 + $0x170] sm:$0xff]
    %v802 = vld [vmem:[%s754 + $0x178] sm:$0xff]
    %v803 = vld [vmem:[%s754 + $0x180] sm:$0xff]
    %v804 = vld [vmem:[%s754 + $0x188] sm:$0xff]
    %v805 = vld [vmem:[%s754 + $0x190] sm:$0xff]
    %v806 = vld [vmem:[%s754 + $0x198] sm:$0xff]
    %v807 = vld [vmem:[%s754 + $0x1a0] sm:$0xff]
    %v808 = vld [vmem:[%s754 + $0x1a8] sm:$0xff]
    %v809 = vld [vmem:[%s754 + $0x1b0] sm:$0xff]
    %v810 = vld [vmem:[%s754 + $0x1b8] sm:$0xff]
    %v811 = vld [vmem:[%s754 + $0x1c0] sm:$0xff]
    %v812 = vld [vmem:[%s754 + $0x1c8] sm:$0xff]
    %v813 = vld [vmem:[%s754 + $0x1d0] sm:$0xff]
    %v814 = vld [vmem:[%s754 + $0x1d8] sm:$0xff]
    %v815 = vld [vmem:[%s754 + $0x1e0] sm:$0xff]
    %v816 = vld [vmem:[%s754 + $0x1e8] sm:$0xff]
    %v817 = vld [vmem:[%s754 + $0x1f0] sm:$0xff]
    %v818 = vld [vmem:[%s754 + $0x1f8] sm:$0xff]
    %v819 = vld [vmem:[%s754 + $0x200] sm:$0xff]
    %v820 = vld [vmem:[%s754 + $0x208] sm:$0xff]
    %v821 = vld [vmem:[%s754 + $0x210] sm:$0xff]
    %v822 = vld [vmem:[%s754 + $0x218] sm:$0xff]
    %v823 = vld [vmem:[%s754 + $0x220] sm:$0xff]
    %v824 = vld [vmem:[%s754 + $0x228] sm:$0xff]
    %v825 = vld [vmem:[%s754 + $0x230] sm:$0xff]
    %v826 = vld [vmem:[%s754 + $0x238] sm:$0xff]
    %v827 = vld [vmem:[%s754 + $0x240] sm:$0xff]
    %v828 = vld [vmem:[%s754 + $0x248] sm:$0xff]
    %v829 = vld [vmem:[%s754 + $0x250] sm:$0xff]
    %v830 = vld [vmem:[%s754 + $0x258] sm:$0xff]
    %v831 = vld [vmem:[%s754 + $0x260] sm:$0xff]
    %v832 = vld [vmem:[%s754 + $0x268] sm:$0xff]
    %v833 = vld [vmem:[%s754 + $0x270] sm:$0xff]
    %v834 = vld [vmem:[%s754 + $0x278] sm:$0xff]
    %v835 = vld [vmem:[%s754 + $0x280] sm:$0xff]
    %v836 = vld [vmem:[%s754 + $0x288] sm:$0xff]
    %v837 = vld [vmem:[%s754 + $0x290] sm:$0xff]
    %v838 = vld [vmem:[%s754 + $0x298] sm:$0xff]
    %v839 = vld [vmem:[%s754 + $0x2a0] sm:$0xff]
    %v840 = vld [vmem:[%s754 + $0x2a8] sm:$0xff]
    %v841 = vld [vmem:[%s754 + $0x2b0] sm:$0xff]
    %v842 = vld [vmem:[%s754 + $0x2b8] sm:$0xff]
    %v843 = vld [vmem:[%s754 + $0x2c0] sm:$0xff]
    %v844 = vld [vmem:[%s754 + $0x2c8] sm:$0xff]
    %v845 = vld [vmem:[%s754 + $0x2d0] sm:$0xff]
    %v846 = vld [vmem:[%s754 + $0x2d8] sm:$0xff]
    %v847 = vld [vmem:[%s754 + $0x2e0] sm:$0xff]
    %v848 = vld [vmem:[%s754 + $0x2e8] sm:$0xff]
    %v849 = vld [vmem:[%s754 + $0x2f0] sm:$0xff]
    %v850 = vld [vmem:[%s754 + $0x2f8] sm:$0xff]
    %v851 = vld [vmem:[%s754 + $0x300] sm:$0xff]
    %v852 = vld [vmem:[%s754 + $0x308] sm:$0xff]
    %v853 = vld [vmem:[%s754 + $0x310] sm:$0xff]
    %v854 = vld [vmem:[%s754 + $0x318] sm:$0xff]
    %v855 = vld [vmem:[%s754 + $0x320] sm:$0xff]
    %v856 = vld [vmem:[%s754 + $0x328] sm:$0xff]
    %v857 = vld [vmem:[%s754 + $0x330] sm:$0xff]
    %v858 = vld [vmem:[%s754 + $0x338] sm:$0xff]
    %v859 = vld [vmem:[%s754 + $0x340] sm:$0xff]
    %v860 = vld [vmem:[%s754 + $0x348] sm:$0xff]
    %v861 = vld [vmem:[%s754 + $0x350] sm:$0xff]
    %v862 = vld [vmem:[%s754 + $0x358] sm:$0xff]
    %v863 = vld [vmem:[%s754 + $0x360] sm:$0xff]
    %v864 = vld [vmem:[%s754 + $0x368] sm:$0xff]
    %v865 = vld [vmem:[%s754 + $0x370] sm:$0xff]
    %v866 = vld [vmem:[%s754 + $0x378] sm:$0xff]
    %v867 = vld [vmem:[%s754 + $0x380] sm:$0xff]
    %v868 = vld [vmem:[%s754 + $0x388] sm:$0xff]
    %v869 = vld [vmem:[%s754 + $0x390] sm:$0xff]
    %v870 = vld [vmem:[%s754 + $0x398] sm:$0xff]
    %v871 = vld [vmem:[%s754 + $0x3a0] sm:$0xff]
    %v872 = vld [vmem:[%s754 + $0x3a8] sm:$0xff]
    %v873 = vld [vmem:[%s754 + $0x3b0] sm:$0xff]
    %v874 = vld [vmem:[%s754 + $0x3b8] sm:$0xff]
    %v875 = vld [vmem:[%s754 + $0x3c0] sm:$0xff]
    %v876 = vld [vmem:[%s754 + $0x3c8] sm:$0xff]
    %v877 = vld [vmem:[%s754 + $0x3d0] sm:$0xff]
    %v878 = vld [vmem:[%s754 + $0x3d8] sm:$0xff]
    %v879 = vld [vmem:[%s754 + $0x3e0] sm:$0xff]
    %v880 = vld [vmem:[%s754 + $0x3e8] sm:$0xff]
    %v881 = vld [vmem:[%s754 + $0x3f0] sm:$0xff]
    %v882 = vld [vmem:[%s754 + $0x3f8] sm:$0xff]
    %v883 = vld [vmem:[%s754 + $0x400] sm:$0xff]
    %v884 = vld [vmem:[%s754 + $0x408] sm:$0xff]
    %v885 = vld [vmem:[%s754 + $0x410] sm:$0xff]
    %v886 = vld [vmem:[%s754 + $0x418] sm:$0xff]
    %v887 = vld [vmem:[%s754 + $0x420] sm:$0xff]
    %v888 = vld [vmem:[%s754 + $0x428] sm:$0xff]
    %v889 = vld [vmem:[%s754 + $0x430] sm:$0xff]
    %v890 = vld [vmem:[%s754 + $0x438] sm:$0xff]
    %v891 = vld [vmem:[%s754 + $0x440] sm:$0xff]
    %v892 = vld [vmem:[%s754 + $0x448] sm:$0xff]
    %v893 = vld [vmem:[%s754 + $0x450] sm:$0xff]
    %v894 = vld [vmem:[%s754 + $0x458] sm:$0xff]
    %v895 = vld [vmem:[%s754 + $0x460] sm:$0xff]
    %v896 = vld [vmem:[%s754 + $0x468] sm:$0xff]
    %v897 = vld [vmem:[%s754 + $0x470] sm:$0xff]
    %v898 = vld [vmem:[%s754 + $0x478] sm:$0xff]
    %v899 = vld [vmem:[%s754 + $0x480] sm:$0xff]
    %v900 = vld [vmem:[%s754 + $0x488] sm:$0xff]
    %v901 = vld [vmem:[%s754 + $0x490] sm:$0xff]
    %v902 = vld [vmem:[%s754 + $0x498] sm:$0xff]
    %v903 = vld [vmem:[%s754 + $0x4a0] sm:$0xff]
    %v904 = vld [vmem:[%s754 + $0x4a8] sm:$0xff]
    %v905 = vld [vmem:[%s754 + $0x4b0] sm:$0xff]
    %v906 = vld [vmem:[%s754 + $0x4b8] sm:$0xff]
    %v907 = vld [vmem:[%s754 + $0x4c0] sm:$0xff]
    %v908 = vld [vmem:[%s754 + $0x4c8] sm:$0xff]
    %v909 = vld [vmem:[%s754 + $0x4d0] sm:$0xff]
    %v910 = vld [vmem:[%s754 + $0x4d8] sm:$0xff]
    %v911 = vld [vmem:[%s754 + $0x4e0] sm:$0xff]
    %v912 = vld [vmem:[%s754 + $0x4e8] sm:$0xff]
    %v913 = vld [vmem:[%s754 + $0x4f0] sm:$0xff]
    %v914 = vld [vmem:[%s754 + $0x4f8] sm:$0xff]
    %v915 = vld [vmem:[%s754 + $0x500] sm:$0xff]
    %v916 = vld [vmem:[%s754 + $0x508] sm:$0xff]
    %v917 = vld [vmem:[%s754 + $0x510] sm:$0xff]
    %v918 = vld [vmem:[%s754 + $0x518] sm:$0xff]
    %v919 = vld [vmem:[%s754 + $0x520] sm:$0xff]
    %v920 = vld [vmem:[%s754 + $0x528] sm:$0xff]
    %v921 = vld [vmem:[%s754 + $0x530] sm:$0xff]
    %v922 = vld [vmem:[%s754 + $0x538] sm:$0xff]
    %v923 = vld [vmem:[%s754 + $0x540] sm:$0xff]
    %v924 = vld [vmem:[%s754 + $0x548] sm:$0xff]
    %v925 = vld [vmem:[%s754 + $0x550] sm:$0xff]
    %v926 = vld [vmem:[%s754 + $0x558] sm:$0xff]
    %v927 = vld [vmem:[%s754 + $0x560] sm:$0xff]
    %v928 = vld [vmem:[%s754 + $0x568] sm:$0xff]
    %v929 = vld [vmem:[%s754 + $0x570] sm:$0xff]
    %v930 = vld [vmem:[%s754 + $0x578] sm:$0xff]
    %v931 = vld [vmem:[%s754 + $0x580] sm:$0xff]
    %v932 = vld [vmem:[%s754 + $0x588] sm:$0xff]
    %v933 = vld [vmem:[%s754 + $0x590] sm:$0xff]
    %v934 = vld [vmem:[%s754 + $0x598] sm:$0xff]
    %v935 = vld [vmem:[%s754 + $0x5a0] sm:$0xff]
    %v936 = vld [vmem:[%s754 + $0x5a8] sm:$0xff]
    %v937 = vld [vmem:[%s754 + $0x5b0] sm:$0xff]
    %v938 = vld [vmem:[%s754 + $0x5b8] sm:$0xff]
    %v939 = vld [vmem:[%s754 + $0x5c0] sm:$0xff]
    %v940 = vld [vmem:[%s754 + $0x5c8] sm:$0xff]
    %v941 = vld [vmem:[%s754 + $0x5d0] sm:$0xff]
    %v942 = vld [vmem:[%s754 + $0x5d8] sm:$0xff]
    %v943 = vld [vmem:[%s754 + $0x5e0] sm:$0xff]
    %v944 = vld [vmem:[%s754 + $0x5e8] sm:$0xff]
    %v945 = vld [vmem:[%s754 + $0x5f0] sm:$0xff]
    %v946 = vld [vmem:[%s754 + $0x5f8] sm:$0xff]
    %v947 = vld [vmem:[%s754 + $0x600] sm:$0xff]
    %v948 = vld [vmem:[%s754 + $0x608] sm:$0xff]
    %v949 = vld [vmem:[%s754 + $0x610] sm:$0xff]
    %v950 = vld [vmem:[%s754 + $0x618] sm:$0xff]
    %v951 = vld [vmem:[%s754 + $0x620] sm:$0xff]
    %v952 = vld [vmem:[%s754 + $0x628] sm:$0xff]
    %v953 = vld [vmem:[%s754 + $0x630] sm:$0xff]
    %v954 = vld [vmem:[%s754 + $0x638] sm:$0xff]
    %v955 = vld [vmem:[%s754 + $0x640] sm:$0xff]
    %v956 = vld [vmem:[%s754 + $0x648] sm:$0xff]
    %v957 = vld [vmem:[%s754 + $0x650] sm:$0xff]
    %v958 = vld [vmem:[%s754 + $0x658] sm:$0xff]
    %v959 = vld [vmem:[%s754 + $0x660] sm:$0xff]
    %v960 = vld [vmem:[%s754 + $0x668] sm:$0xff]
    %v961 = vld [vmem:[%s754 + $0x670] sm:$0xff]
    %v962 = vld [vmem:[%s754 + $0x678] sm:$0xff]
    %v963 = vld [vmem:[%s754 + $0x680] sm:$0xff]
    %v964 = vld [vmem:[%s754 + $0x688] sm:$0xff]
    %v965 = vld [vmem:[%s754 + $0x690] sm:$0xff]
    %v966 = vld [vmem:[%s754 + $0x698] sm:$0xff]
    %v967 = vld [vmem:[%s754 + $0x6a0] sm:$0xff]
    %v968 = vld [vmem:[%s754 + $0x6a8] sm:$0xff]
    %v969 = vld [vmem:[%s754 + $0x6b0] sm:$0xff]
    %v970 = vld [vmem:[%s754 + $0x6b8] sm:$0xff]
    %v971 = vld [vmem:[%s754 + $0x6c0] sm:$0xff]
    %v972 = vld [vmem:[%s754 + $0x6c8] sm:$0xff]
    %v973 = vld [vmem:[%s754 + $0x6d0] sm:$0xff]
    %v974 = vld [vmem:[%s754 + $0x6d8] sm:$0xff]
    %v975 = vld [vmem:[%s754 + $0x6e0] sm:$0xff]
    %v976 = vld [vmem:[%s754 + $0x6e8] sm:$0xff]
    %v977 = vld [vmem:[%s754 + $0x6f0] sm:$0xff]
    %v978 = vld [vmem:[%s754 + $0x6f8] sm:$0xff]
    %v979 = vld [vmem:[%s754 + $0x700] sm:$0xff]
    %v980 = vld [vmem:[%s754 + $0x708] sm:$0xff]
    %v981 = vld [vmem:[%s754 + $0x710] sm:$0xff]
    %v982 = vld [vmem:[%s754 + $0x718] sm:$0xff]
    %v983 = vld [vmem:[%s754 + $0x720] sm:$0xff]
    %v984 = vld [vmem:[%s754 + $0x728] sm:$0xff]
    %v985 = vld [vmem:[%s754 + $0x730] sm:$0xff]
    %v986 = vld [vmem:[%s754 + $0x738] sm:$0xff]
    %v987 = vld [vmem:[%s754 + $0x740] sm:$0xff]
    %v988 = vld [vmem:[%s754 + $0x748] sm:$0xff]
    %v989 = vld [vmem:[%s754 + $0x750] sm:$0xff]
    %v990 = vld [vmem:[%s754 + $0x758] sm:$0xff]
    %v991 = vld [vmem:[%s754 + $0x760] sm:$0xff]
    %v992 = vld [vmem:[%s754 + $0x768] sm:$0xff]
    %v993 = vld [vmem:[%s754 + $0x770] sm:$0xff]
    %v994 = vld [vmem:[%s754 + $0x778] sm:$0xff]
    %v995 = vld [vmem:[%s754 + $0x780] sm:$0xff]
    %v996 = vld [vmem:[%s754 + $0x788] sm:$0xff]
    %v997 = vld [vmem:[%s754 + $0x790] sm:$0xff]
    %v998 = vld [vmem:[%s754 + $0x798] sm:$0xff]
    %v999 = vld [vmem:[%s754 + $0x7a0] sm:$0xff]
    %v1000 = vld [vmem:[%s754 + $0x7a8] sm:$0xff]
    %v1001 = vld [vmem:[%s754 + $0x7b0] sm:$0xff]
    %v1002 = vld [vmem:[%s754 + $0x7b8] sm:$0xff]
    %v1003 = vld [vmem:[%s754 + $0x7c0] sm:$0xff]
    %v1004 = vld [vmem:[%s754 + $0x7c8] sm:$0xff]
    %v1005 = vld [vmem:[%s754 + $0x7d0] sm:$0xff]
    %v1006 = vld [vmem:[%s754 + $0x7d8] sm:$0xff]
    %v1007 = vld [vmem:[%s754 + $0x7e0] sm:$0xff]
    %v1008 = vld [vmem:[%s754 + $0x7e8] sm:$0xff]
    %v1009 = vld [vmem:[%s754 + $0x7f0] sm:$0xff]
    %v1010 = vld [vmem:[%s754 + $0x7f8] sm:$0xff]
    %1011 = vmatpush.msra.mxu0 %v770
    %1012 = vmatpush.msra.mxu0 %v769
    %1013 = vmatpush.msra.mxu0 %v768
    %1014 = vmatpush.msra.mxu0 %v767
    %1015 = vmatpush.msra.mxu0 %v766
    %1016 = vmatpush.msra.mxu0 %v765
    %1017 = vmatpush.msra.mxu0 %v764
    %1018 = vmatpush.msra.mxu0 %v763
    %1019 = vmatpush.msra.mxu0 %v762
    %1020 = vmatpush.msra.mxu0 %v761
    %1021 = vmatpush.msra.mxu0 %v760
    %1022 = vmatpush.msra.mxu0 %v759
    %1023 = vmatpush.msra.mxu0 %v758
    %1024 = vmatpush.msra.mxu0 %v757
    %1025 = vmatpush.msra.mxu0 %v756
    %1026 = vmatpush.msra.mxu0 %v755
    %1027 = vmatmul.f32.gmra.mxu0 %v29
    %v1028 = vpop.f32.mrf.mxu0
    %v1029 = vadd.f32 0.0, %v1028
    %1030 = vmatmul.f32.gmra.mxu0 %v45
    %v1031 = vpop.f32.mrf.mxu0
    %v1032 = vadd.f32 0.0, %v1031
    %1033 = vmatmul.f32.gmra.mxu0 %v61
    %v1034 = vpop.f32.mrf.mxu0
    %v1035 = vadd.f32 0.0, %v1034
    %1036 = vdwg.mxu0
    %1037 = vmatpush.msra.mxu0 %v786
    %1038 = vmatpush.msra.mxu0 %v785
    %1039 = vmatpush.msra.mxu0 %v784
    %1040 = vmatpush.msra.mxu0 %v783
    %1041 = vmatpush.msra.mxu0 %v782
    %1042 = vmatpush.msra.mxu0 %v781
    %1043 = vmatpush.msra.mxu0 %v780
    %1044 = vmatpush.msra.mxu0 %v779
    %1045 = vmatpush.msra.mxu0 %v778
    %1046 = vmatpush.msra.mxu0 %v777
    %1047 = vmatpush.msra.mxu0 %v776
    %1048 = vmatpush.msra.mxu0 %v775
    %1049 = vmatpush.msra.mxu0 %v774
    %1050 = vmatpush.msra.mxu0 %v773
    %1051 = vmatpush.msra.mxu0 %v772
    %1052 = vmatpush.msra.mxu0 %v771
    %1053 = vmatmul.f32.gmra.mxu0 %v30
    %v1054 = vpop.f32.mrf.mxu0
    %v1055 = vadd.f32 %v1029, %v1054
    %1056 = vmatmul.f32.gmra.mxu0 %v46
    %v1057 = vpop.f32.mrf.mxu0
    %v1058 = vadd.f32 %v1032, %v1057
    %1059 = vmatmul.f32.gmra.mxu0 %v62
    %v1060 = vpop.f32.mrf.mxu0
    %v1061 = vadd.f32 %v1035, %v1060
    %1062 = vdwg.mxu0
    %1063 = vmatpush.msra.mxu0 %v802
    %1064 = vmatpush.msra.mxu0 %v801
    %1065 = vmatpush.msra.mxu0 %v800
    %1066 = vmatpush.msra.mxu0 %v799
    %1067 = vmatpush.msra.mxu0 %v798
    %1068 = vmatpush.msra.mxu0 %v797
    %1069 = vmatpush.msra.mxu0 %v796
    %1070 = vmatpush.msra.mxu0 %v795
    %1071 = vmatpush.msra.mxu0 %v794
    %1072 = vmatpush.msra.mxu0 %v793
    %1073 = vmatpush.msra.mxu0 %v792
    %1074 = vmatpush.msra.mxu0 %v791
    %1075 = vmatpush.msra.mxu0 %v790
    %1076 = vmatpush.msra.mxu0 %v789
    %1077 = vmatpush.msra.mxu0 %v788
    %1078 = vmatpush.msra.mxu0 %v787
    %1079 = vmatmul.f32.gmra.mxu0 %v31
    %v1080 = vpop.f32.mrf.mxu0
    %v1081 = vadd.f32 %v1055, %v1080
    %1082 = vmatmul.f32.gmra.mxu0 %v47
    %v1083 = vpop.f32.mrf.mxu0
    %v1084 = vadd.f32 %v1058, %v1083
    %1085 = vmatmul.f32.gmra.mxu0 %v63
    %v1086 = vpop.f32.mrf.mxu0
    %v1087 = vadd.f32 %v1061, %v1086
    %1088 = vdwg.mxu0
    %1089 = vmatpush.msra.mxu0 %v818
    %1090 = vmatpush.msra.mxu0 %v817
    %1091 = vmatpush.msra.mxu0 %v816
    %1092 = vmatpush.msra.mxu0 %v815
    %1093 = vmatpush.msra.mxu0 %v814
    %1094 = vmatpush.msra.mxu0 %v813
    %1095 = vmatpush.msra.mxu0 %v812
    %1096 = vmatpush.msra.mxu0 %v811
    %1097 = vmatpush.msra.mxu0 %v810
    %1098 = vmatpush.msra.mxu0 %v809
    %1099 = vmatpush.msra.mxu0 %v808
    %1100 = vmatpush.msra.mxu0 %v807
    %1101 = vmatpush.msra.mxu0 %v806
    %1102 = vmatpush.msra.mxu0 %v805
    %1103 = vmatpush.msra.mxu0 %v804
    %1104 = vmatpush.msra.mxu0 %v803
    %1105 = vmatmul.f32.gmra.mxu0 %v32
    %v1106 = vpop.f32.mrf.mxu0
    %v1107 = vadd.f32 %v1081, %v1106
    %1108 = vmatmul.f32.gmra.mxu0 %v48
    %v1109 = vpop.f32.mrf.mxu0
    %v1110 = vadd.f32 %v1084, %v1109
    %1111 = vmatmul.f32.gmra.mxu0 %v64
    %v1112 = vpop.f32.mrf.mxu0
    %v1113 = vadd.f32 %v1087, %v1112
    %1114 = vdwg.mxu0
    %1115 = vmatpush.msra.mxu0 %v834
    %1116 = vmatpush.msra.mxu0 %v833
    %1117 = vmatpush.msra.mxu0 %v832
    %1118 = vmatpush.msra.mxu0 %v831
    %1119 = vmatpush.msra.mxu0 %v830
    %1120 = vmatpush.msra.mxu0 %v829
    %1121 = vmatpush.msra.mxu0 %v828
    %1122 = vmatpush.msra.mxu0 %v827
    %1123 = vmatpush.msra.mxu0 %v826
    %1124 = vmatpush.msra.mxu0 %v825
    %1125 = vmatpush.msra.mxu0 %v824
    %1126 = vmatpush.msra.mxu0 %v823
    %1127 = vmatpush.msra.mxu0 %v822
    %1128 = vmatpush.msra.mxu0 %v821
    %1129 = vmatpush.msra.mxu0 %v820
    %1130 = vmatpush.msra.mxu0 %v819
    %1131 = vmatmul.f32.gmra.mxu0 %v33
    %v1132 = vpop.f32.mrf.mxu0
    %v1133 = vadd.f32 %v1107, %v1132
    %1134 = vmatmul.f32.gmra.mxu0 %v49
    %v1135 = vpop.f32.mrf.mxu0
    %v1136 = vadd.f32 %v1110, %v1135
    %1137 = vmatmul.f32.gmra.mxu0 %v65
    %v1138 = vpop.f32.mrf.mxu0
    %v1139 = vadd.f32 %v1113, %v1138
    %1140 = vdwg.mxu0
    %1141 = vmatpush.msra.mxu0 %v850
    %1142 = vmatpush.msra.mxu0 %v849
    %1143 = vmatpush.msra.mxu0 %v848
    %1144 = vmatpush.msra.mxu0 %v847
    %1145 = vmatpush.msra.mxu0 %v846
    %1146 = vmatpush.msra.mxu0 %v845
    %1147 = vmatpush.msra.mxu0 %v844
    %1148 = vmatpush.msra.mxu0 %v843
    %1149 = vmatpush.msra.mxu0 %v842
    %1150 = vmatpush.msra.mxu0 %v841
    %1151 = vmatpush.msra.mxu0 %v840
    %1152 = vmatpush.msra.mxu0 %v839
    %1153 = vmatpush.msra.mxu0 %v838
    %1154 = vmatpush.msra.mxu0 %v837
    %1155 = vmatpush.msra.mxu0 %v836
    %1156 = vmatpush.msra.mxu0 %v835
    %1157 = vmatmul.f32.gmra.mxu0 %v34
    %v1158 = vpop.f32.mrf.mxu0
    %v1159 = vadd.f32 %v1133, %v1158
    %1160 = vmatmul.f32.gmra.mxu0 %v50
    %v1161 = vpop.f32.mrf.mxu0
    %v1162 = vadd.f32 %v1136, %v1161
    %1163 = vmatmul.f32.gmra.mxu0 %v66
    %v1164 = vpop.f32.mrf.mxu0
    %v1165 = vadd.f32 %v1139, %v1164
    %1166 = vdwg.mxu0
    %1167 = vmatpush.msra.mxu0 %v866
    %1168 = vmatpush.msra.mxu0 %v865
    %1169 = vmatpush.msra.mxu0 %v864
    %1170 = vmatpush.msra.mxu0 %v863
    %1171 = vmatpush.msra.mxu0 %v862
    %1172 = vmatpush.msra.mxu0 %v861
    %1173 = vmatpush.msra.mxu0 %v860
    %1174 = vmatpush.msra.mxu0 %v859
    %1175 = vmatpush.msra.mxu0 %v858
    %1176 = vmatpush.msra.mxu0 %v857
    %1177 = vmatpush.msra.mxu0 %v856
    %1178 = vmatpush.msra.mxu0 %v855
    %1179 = vmatpush.msra.mxu0 %v854
    %1180 = vmatpush.msra.mxu0 %v853
    %1181 = vmatpush.msra.mxu0 %v852
    %1182 = vmatpush.msra.mxu0 %v851
    %1183 = vmatmul.f32.gmra.mxu0 %v35
    %v1184 = vpop.f32.mrf.mxu0
    %v1185 = vadd.f32 %v1159, %v1184
    %1186 = vmatmul.f32.gmra.mxu0 %v51
    %v1187 = vpop.f32.mrf.mxu0
    %v1188 = vadd.f32 %v1162, %v1187
    %1189 = vmatmul.f32.gmra.mxu0 %v67
    %v1190 = vpop.f32.mrf.mxu0
    %v1191 = vadd.f32 %v1165, %v1190
    %1192 = vdwg.mxu0
    %1193 = vmatpush.msra.mxu0 %v882
    %1194 = vmatpush.msra.mxu0 %v881
    %1195 = vmatpush.msra.mxu0 %v880
    %1196 = vmatpush.msra.mxu0 %v879
    %1197 = vmatpush.msra.mxu0 %v878
    %1198 = vmatpush.msra.mxu0 %v877
    %1199 = vmatpush.msra.mxu0 %v876
    %1200 = vmatpush.msra.mxu0 %v875
    %1201 = vmatpush.msra.mxu0 %v874
    %1202 = vmatpush.msra.mxu0 %v873
    %1203 = vmatpush.msra.mxu0 %v872
    %1204 = vmatpush.msra.mxu0 %v871
    %1205 = vmatpush.msra.mxu0 %v870
    %1206 = vmatpush.msra.mxu0 %v869
    %1207 = vmatpush.msra.mxu0 %v868
    %1208 = vmatpush.msra.mxu0 %v867
    %1209 = vmatmul.f32.gmra.mxu0 %v36
    %v1210 = vpop.f32.mrf.mxu0
    %v1211 = vadd.f32 %v1185, %v1210
    %1212 = vmatmul.f32.gmra.mxu0 %v52
    %v1213 = vpop.f32.mrf.mxu0
    %v1214 = vadd.f32 %v1188, %v1213
    %1215 = vmatmul.f32.gmra.mxu0 %v68
    %v1216 = vpop.f32.mrf.mxu0
    %v1217 = vadd.f32 %v1191, %v1216
    %1218 = vdwg.mxu0
    %1219 = vmatpush.msra.mxu0 %v898
    %1220 = vmatpush.msra.mxu0 %v897
    %1221 = vmatpush.msra.mxu0 %v896
    %1222 = vmatpush.msra.mxu0 %v895
    %1223 = vmatpush.msra.mxu0 %v894
    %1224 = vmatpush.msra.mxu0 %v893
    %1225 = vmatpush.msra.mxu0 %v892
    %1226 = vmatpush.msra.mxu0 %v891
    %1227 = vmatpush.msra.mxu0 %v890
    %1228 = vmatpush.msra.mxu0 %v889
    %1229 = vmatpush.msra.mxu0 %v888
    %1230 = vmatpush.msra.mxu0 %v887
    %1231 = vmatpush.msra.mxu0 %v886
    %1232 = vmatpush.msra.mxu0 %v885
    %1233 = vmatpush.msra.mxu0 %v884
    %1234 = vmatpush.msra.mxu0 %v883
    %1235 = vmatmul.f32.gmra.mxu0 %v37
    %v1236 = vpop.f32.mrf.mxu0
    %v1237 = vadd.f32 %v1211, %v1236
    %1238 = vmatmul.f32.gmra.mxu0 %v53
    %v1239 = vpop.f32.mrf.mxu0
    %v1240 = vadd.f32 %v1214, %v1239
    %1241 = vmatmul.f32.gmra.mxu0 %v69
    %v1242 = vpop.f32.mrf.mxu0
    %v1243 = vadd.f32 %v1217, %v1242
    %1244 = vdwg.mxu0
    %1245 = vmatpush.msra.mxu0 %v914
    %1246 = vmatpush.msra.mxu0 %v913
    %1247 = vmatpush.msra.mxu0 %v912
    %1248 = vmatpush.msra.mxu0 %v911
    %1249 = vmatpush.msra.mxu0 %v910
    %1250 = vmatpush.msra.mxu0 %v909
    %1251 = vmatpush.msra.mxu0 %v908
    %1252 = vmatpush.msra.mxu0 %v907
    %1253 = vmatpush.msra.mxu0 %v906
    %1254 = vmatpush.msra.mxu0 %v905
    %1255 = vmatpush.msra.mxu0 %v904
    %1256 = vmatpush.msra.mxu0 %v903
    %1257 = vmatpush.msra.mxu0 %v902
    %1258 = vmatpush.msra.mxu0 %v901
    %1259 = vmatpush.msra.mxu0 %v900
    %1260 = vmatpush.msra.mxu0 %v899
    %1261 = vmatmul.f32.gmra.mxu0 %v38
    %v1262 = vpop.f32.mrf.mxu0
    %v1263 = vadd.f32 %v1237, %v1262
    %1264 = vmatmul.f32.gmra.mxu0 %v54
    %v1265 = vpop.f32.mrf.mxu0
    %v1266 = vadd.f32 %v1240, %v1265
    %1267 = vmatmul.f32.gmra.mxu0 %v70
    %v1268 = vpop.f32.mrf.mxu0
    %v1269 = vadd.f32 %v1243, %v1268
    %1270 = vdwg.mxu0
    %1271 = vmatpush.msra.mxu0 %v930
    %1272 = vmatpush.msra.mxu0 %v929
    %1273 = vmatpush.msra.mxu0 %v928
    %1274 = vmatpush.msra.mxu0 %v927
    %1275 = vmatpush.msra.mxu0 %v926
    %1276 = vmatpush.msra.mxu0 %v925
    %1277 = vmatpush.msra.mxu0 %v924
    %1278 = vmatpush.msra.mxu0 %v923
    %1279 = vmatpush.msra.mxu0 %v922
    %1280 = vmatpush.msra.mxu0 %v921
    %1281 = vmatpush.msra.mxu0 %v920
    %1282 = vmatpush.msra.mxu0 %v919
    %1283 = vmatpush.msra.mxu0 %v918
    %1284 = vmatpush.msra.mxu0 %v917
    %1285 = vmatpush.msra.mxu0 %v916
    %1286 = vmatpush.msra.mxu0 %v915
    %1287 = vmatmul.f32.gmra.mxu0 %v39
    %v1288 = vpop.f32.mrf.mxu0
    %v1289 = vadd.f32 %v1263, %v1288
    %1290 = vmatmul.f32.gmra.mxu0 %v55
    %v1291 = vpop.f32.mrf.mxu0
    %v1292 = vadd.f32 %v1266, %v1291
    %1293 = vmatmul.f32.gmra.mxu0 %v71
    %v1294 = vpop.f32.mrf.mxu0
    %v1295 = vadd.f32 %v1269, %v1294
    %1296 = vdwg.mxu0
    %1297 = vmatpush.msra.mxu0 %v946
    %1298 = vmatpush.msra.mxu0 %v945
    %1299 = vmatpush.msra.mxu0 %v944
    %1300 = vmatpush.msra.mxu0 %v943
    %1301 = vmatpush.msra.mxu0 %v942
    %1302 = vmatpush.msra.mxu0 %v941
    %1303 = vmatpush.msra.mxu0 %v940
    %1304 = vmatpush.msra.mxu0 %v939
    %1305 = vmatpush.msra.mxu0 %v938
    %1306 = vmatpush.msra.mxu0 %v937
    %1307 = vmatpush.msra.mxu0 %v936
    %1308 = vmatpush.msra.mxu0 %v935
    %1309 = vmatpush.msra.mxu0 %v934
    %1310 = vmatpush.msra.mxu0 %v933
    %1311 = vmatpush.msra.mxu0 %v932
    %1312 = vmatpush.msra.mxu0 %v931
    %1313 = vmatmul.f32.gmra.mxu0 %v40
    %v1314 = vpop.f32.mrf.mxu0
    %v1315 = vadd.f32 %v1289, %v1314
    %1316 = vmatmul.f32.gmra.mxu0 %v56
    %v1317 = vpop.f32.mrf.mxu0
    %v1318 = vadd.f32 %v1292, %v1317
    %1319 = vmatmul.f32.gmra.mxu0 %v72
    %v1320 = vpop.f32.mrf.mxu0
    %v1321 = vadd.f32 %v1295, %v1320
    %1322 = vdwg.mxu0
    %1323 = vmatpush.msra.mxu0 %v962
    %1324 = vmatpush.msra.mxu0 %v961
    %1325 = vmatpush.msra.mxu0 %v960
    %1326 = vmatpush.msra.mxu0 %v959
    %1327 = vmatpush.msra.mxu0 %v958
    %1328 = vmatpush.msra.mxu0 %v957
    %1329 = vmatpush.msra.mxu0 %v956
    %1330 = vmatpush.msra.mxu0 %v955
    %1331 = vmatpush.msra.mxu0 %v954
    %1332 = vmatpush.msra.mxu0 %v953
    %1333 = vmatpush.msra.mxu0 %v952
    %1334 = vmatpush.msra.mxu0 %v951
    %1335 = vmatpush.msra.mxu0 %v950
    %1336 = vmatpush.msra.mxu0 %v949
    %1337 = vmatpush.msra.mxu0 %v948
    %1338 = vmatpush.msra.mxu0 %v947
    %1339 = vmatmul.f32.gmra.mxu0 %v41
    %v1340 = vpop.f32.mrf.mxu0
    %v1341 = vadd.f32 %v1315, %v1340
    %1342 = vmatmul.f32.gmra.mxu0 %v57
    %v1343 = vpop.f32.mrf.mxu0
    %v1344 = vadd.f32 %v1318, %v1343
    %1345 = vmatmul.f32.gmra.mxu0 %v73
    %v1346 = vpop.f32.mrf.mxu0
    %v1347 = vadd.f32 %v1321, %v1346
    %1348 = vdwg.mxu0
    %1349 = vmatpush.msra.mxu0 %v978
    %1350 = vmatpush.msra.mxu0 %v977
    %1351 = vmatpush.msra.mxu0 %v976
    %1352 = vmatpush.msra.mxu0 %v975
    %1353 = vmatpush.msra.mxu0 %v974
    %1354 = vmatpush.msra.mxu0 %v973
    %1355 = vmatpush.msra.mxu0 %v972
    %1356 = vmatpush.msra.mxu0 %v971
    %1357 = vmatpush.msra.mxu0 %v970
    %1358 = vmatpush.msra.mxu0 %v969
    %1359 = vmatpush.msra.mxu0 %v968
    %1360 = vmatpush.msra.mxu0 %v967
    %1361 = vmatpush.msra.mxu0 %v966
    %1362 = vmatpush.msra.mxu0 %v965
    %1363 = vmatpush.msra.mxu0 %v964
    %1364 = vmatpush.msra.mxu0 %v963
    %1365 = vmatmul.f32.gmra.mxu0 %v42
    %v1366 = vpop.f32.mrf.mxu0
    %v1367 = vadd.f32 %v1341, %v1366
    %1368 = vmatmul.f32.gmra.mxu0 %v58
    %v1369 = vpop.f32.mrf.mxu0
    %v1370 = vadd.f32 %v1344, %v1369
    %1371 = vmatmul.f32.gmra.mxu0 %v74
    %v1372 = vpop.f32.mrf.mxu0
    %v1373 = vadd.f32 %v1347, %v1372
    %1374 = vdwg.mxu0
    %1375 = vmatpush.msra.mxu0 %v994
    %1376 = vmatpush.msra.mxu0 %v993
    %1377 = vmatpush.msra.mxu0 %v992
    %1378 = vmatpush.msra.mxu0 %v991
    %1379 = vmatpush.msra.mxu0 %v990
    %1380 = vmatpush.msra.mxu0 %v989
    %1381 = vmatpush.msra.mxu0 %v988
    %1382 = vmatpush.msra.mxu0 %v987
    %1383 = vmatpush.msra.mxu0 %v986
    %1384 = vmatpush.msra.mxu0 %v985
    %1385 = vmatpush.msra.mxu0 %v984
    %1386 = vmatpush.msra.mxu0 %v983
    %1387 = vmatpush.msra.mxu0 %v982
    %1388 = vmatpush.msra.mxu0 %v981
    %1389 = vmatpush.msra.mxu0 %v980
    %1390 = vmatpush.msra.mxu0 %v979
    %1391 = vmatmul.f32.gmra.mxu0 %v43
    %v1392 = vpop.f32.mrf.mxu0
    %v1393 = vadd.f32 %v1367, %v1392
    %1394 = vmatmul.f32.gmra.mxu0 %v59
    %v1395 = vpop.f32.mrf.mxu0
    %v1396 = vadd.f32 %v1370, %v1395
    %1397 = vmatmul.f32.gmra.mxu0 %v75
    %v1398 = vpop.f32.mrf.mxu0
    %v1399 = vadd.f32 %v1373, %v1398
    %1400 = vdwg.mxu0
    %1401 = vmatpush.msra.mxu0 %v1010
    %1402 = vmatpush.msra.mxu0 %v1009
    %1403 = vmatpush.msra.mxu0 %v1008
    %1404 = vmatpush.msra.mxu0 %v1007
    %1405 = vmatpush.msra.mxu0 %v1006
    %1406 = vmatpush.msra.mxu0 %v1005
    %1407 = vmatpush.msra.mxu0 %v1004
    %1408 = vmatpush.msra.mxu0 %v1003
    %1409 = vmatpush.msra.mxu0 %v1002
    %1410 = vmatpush.msra.mxu0 %v1001
    %1411 = vmatpush.msra.mxu0 %v1000
    %1412 = vmatpush.msra.mxu0 %v999
    %1413 = vmatpush.msra.mxu0 %v998
    %1414 = vmatpush.msra.mxu0 %v997
    %1415 = vmatpush.msra.mxu0 %v996
    %1416 = vmatpush.msra.mxu0 %v995
    %1417 = vmatmul.f32.gmra.mxu0 %v44
    %v1418 = vpop.f32.mrf.mxu0
    %v1419 = vadd.f32 %v1393, %v1418
    %1420 = vmatmul.f32.gmra.mxu0 %v60
    %v1421 = vpop.f32.mrf.mxu0
    %v1422 = vadd.f32 %v1396, %v1421
    %1423 = vmatmul.f32.gmra.mxu0 %v76
    %v1424 = vpop.f32.mrf.mxu0
    %v1425 = vadd.f32 %v1399, %v1424
    %1426 = vdwg.mxu0
    %s1427 = scalar_lea.vmem [#allocation2], 24
    %1428 = vst.msk [vmem:[%s1427] sm:$0xff] %vm749, %v1419
    %1429 = vst.msk [vmem:[%s1427 + $0x8] sm:$0xff] %vm749, %v1422
    %1430 = vst.msk [vmem:[%s1427 + $0x10] sm:$0x1] %vm752, %v1425
    %v1431 = vld [vmem:[#allocation2] sm:$0xff]
    %v1432 = vld [vmem:[#allocation2 + $0x8] sm:$0xff]
    %v1433 = vld [vmem:[#allocation2 + $0x10] sm:$0x1]
    %v1434 = vld [vmem:[#allocation2 + $0x18] sm:$0xff]
    %v1435 = vld [vmem:[#allocation2 + $0x20] sm:$0xff]
    %v1436 = vld [vmem:[#allocation2 + $0x28] sm:$0x1]
    %v1437 = vsel %vm749, %v1431, 0.0
    %1438 = vadd.xlane.f32.xlu0 %v1437
    %v1439 = vpop.xlane.xlu0 %1438
    %vm1440 = vcmask 399360
    %v1441 = vsel %vm1440, %v1432, 0.0
    %1442 = vadd.xlane.f32.xlu0 %v1441
    %v1443 = vpop.xlane.xlu0 %1442
    %v1444 = vsel %vm749, %v1434, 0.0
    %1445 = vadd.xlane.f32.xlu0 %v1444
    %v1446 = vpop.xlane.xlu0 %1445
    %v1447 = vsel %vm1440, %v1435, 0.0
    %1448 = vadd.xlane.f32.xlu0 %v1447
    %v1449 = vpop.xlane.xlu0 %1448
    %v1450 = vadd.f32 %v1439, %v1446
    %vm1451 = vcmask 1046528
    %v1452 = vsel %vm1451, %v1443, 0.0
    %v1453 = vsel %vm1451, %v1449, 0.0
    %v1454 = vadd.f32 %v1452, %v1453
    %v1455 = vrcp.pop 98.0
    %v1456 = vmul.f32 98.0, %v1455
    %v1457 = vsub.f32 1.0, %v1456
    %v1458 = vmul.f32 %v1455, %v1457
    %v1459 = vadd.f32 %v1455, %v1458
    %vm1460 = vweird.f32 %v1455
    %v1461 = vsel %vm1460, %v1455, %v1459
    %v1462 = vmul.f32 %v1450, %v1461
    %v1463 = vmul.f32 %v1454, %v1461
    %v1464 = vsub.f32 %v1431, %v1462
    %v1465 = vsub.f32 %v1432, %v1463
    %v1466 = vsub.f32 %v1434, %v1462
    %v1467 = vsub.f32 %v1435, %v1463
    %v1468 = vmul.f32 %v1464, %v1464
    %v1469 = vmul.f32 %v1465, %v1465
    %v1470 = vmul.f32 %v1466, %v1466
    %v1471 = vmul.f32 %v1467, %v1467
    %v1472 = vsel %vm749, %v1468, 0.0
    %1473 = vadd.xlane.f32.xlu0 %v1472
    %v1474 = vpop.xlane.xlu0 %1473
    %v1475 = vsel %vm1440, %v1469, 0.0
    %1476 = vadd.xlane.f32.xlu0 %v1475
    %v1477 = vpop.xlane.xlu0 %1476
    %v1478 = vsel %vm749, %v1470, 0.0
    %1479 = vadd.xlane.f32.xlu0 %v1478
    %v1480 = vpop.xlane.xlu0 %1479
    %v1481 = vsel %vm1440, %v1471, 0.0
    %1482 = vadd.xlane.f32.xlu0 %v1481
    %v1483 = vpop.xlane.xlu0 %1482
    %v1484 = vadd.f32 %v1474, %v1480
    %v1485 = vsel %vm1451, %v1477, 0.0
    %v1486 = vsel %vm1451, %v1483, 0.0
    %v1487 = vadd.f32 %v1485, %v1486
    %v1488 = vmul.f32 %v1484, %v1461
    %v1489 = vmul.f32 %v1487, %v1461
    %v1490 = vadd.f32 %v1488, 1e-05
    %v1491 = vadd.f32 %v1489, 1e-05
    %v1492 = vrsqrt.pop %v1490
    %v1493 = vmul.f32 %v1492, %v1490
    %v1494 = vmul.f32 %v1493, %v1492
    %v1495 = vmul.f32 0.5, %v1494
    %v1496 = vsub.f32 1.5, %v1495
    %v1497 = vmul.f32 %v1492, %v1496
    %vm1498 = vweird.f32 %v1490
    %vm1499 = vweird.f32 %v1492
    %vm1500 = vmor %vm1498, %vm1499
    %v1501 = vsel %vm1500, %v1492, %v1497
    %v1502 = vrsqrt.pop %v1491
    %v1503 = vmul.f32 %v1502, %v1491
    %v1504 = vmul.f32 %v1503, %v1502
    %v1505 = vmul.f32 0.5, %v1504
    %v1506 = vsub.f32 1.5, %v1505
    %v1507 = vmul.f32 %v1502, %v1506
    %vm1508 = vweird.f32 %v1491
    %vm1509 = vweird.f32 %v1502
    %vm1510 = vmor %vm1508, %vm1509
    %v1511 = vsel %vm1510, %v1502, %v1507
    %v1512 = vmul.f32 %v1464, %v1501
    %v1513 = vmul.f32 %v1465, %v1511
    %v1514 = vmul.f32 %v1466, %v1501
    %v1515 = vmul.f32 %v1467, %v1511
    %v1516 = vld [vmem:[%s3] sm:$0xff]
    %v1517 = vld [vmem:[%s3 + $0x8] sm:$0x7f]
    %1519 = vset.pattern.permute.xlu0 0
    %1520 = vperm.xlu0 %1519, %v1516
    %v1521 = vpop.permute.xlu0 %1520
    %1524 = vset.pattern.permute.xlu0 0
    %1525 = vperm.xlu0 %1524, %v1517
    %v1526 = vpop.permute.xlu0 %1525
    %v1528 = vmul.f32 %v1512, %v1521
    %v1529 = vmul.f32 %v1513, %v1526
    %v1530 = vmul.f32 %v1514, %v1521
    %v1531 = vmul.f32 %v1515, %v1526
    %v1532 = vld [vmem:[%s4] sm:$0xff]
    %v1533 = vld [vmem:[%s4 + $0x8] sm:$0x7f]
    %1535 = vset.pattern.permute.xlu0 0
    %1536 = vperm.xlu0 %1535, %v1532
    %v1537 = vpop.permute.xlu0 %1536
    %1540 = vset.pattern.permute.xlu0 0
    %1541 = vperm.xlu0 %1540, %v1533
    %v1542 = vpop.permute.xlu0 %1541
    %v1544 = vadd.f32 %v1528, %v1537
    %v1545 = vadd.f32 %v1529, %v1542
    %v1546 = vadd.f32 %v1530, %v1537
    %v1547 = vadd.f32 %v1531, %v1542
    %v1548 = vld [vmem:[%s5] sm:$0xff]
    %v1549 = vld [vmem:[%s5 + $0x8] sm:$0x7f]
    %vm1550 = vcmp.gt.f32.partialorder %v1548, 0.5
    %vm1551 = vcmp.gt.f32.partialorder %v1549, 0.5
    %v1552 = vsel %vm1550, 1, 0
    %v1553 = vsel %vm1551, 1, 0
    %1554 = vset.pattern.permute.xlu0 0
    %1555 = vperm.xlu0 %1554, %v1552
    %v1556 = vpop.permute.xlu0 %1555
    %1557 = vset.pattern.permute.xlu0 0
    %1558 = vperm.xlu0 %1557, %v1553
    %v1559 = vpop.permute.xlu0 %1558
    %vm1560 = vcmp.eq.s32.totalorder %v1556, 1
    %vm1561 = vcmp.eq.s32.totalorder %v1559, 1
    %v1562 = vsel %vm1560, %v1544, 0.0
    %v1563 = vsel %vm1561, %v1545, 0.0
    %v1564 = vsel %vm1560, %v1546, 0.0
    %v1565 = vsel %vm1561, %v1547, 0.0
    %v1566 = vmul.f32 %v1562, 1.442695
    %v1567 = vpow.pop %v1566
    %v1568 = vmul.f32 %v1563, 1.442695
    %v1569 = vpow.pop %v1568
    %v1570 = vmul.f32 %v1564, 1.442695
    %v1571 = vpow.pop %v1570
    %v1572 = vmul.f32 %v1565, 1.442695
    %v1573 = vpow.pop %v1572
    %v1574 = vld [vmem:[%s6] sm:$0xff]
    %v1575 = vld [vmem:[%s6 + $0x8] sm:$0x7f]
    %1577 = vset.pattern.permute.xlu0 0
    %1578 = vperm.xlu0 %1577, %v1574
    %v1579 = vpop.permute.xlu0 %1578
    %1582 = vset.pattern.permute.xlu0 0
    %1583 = vperm.xlu0 %1582, %v1575
    %v1584 = vpop.permute.xlu0 %1583
    %v1586 = vmul.f32 %v1567, %v1579
    %v1587 = vmul.f32 %v1569, %v1584
    %v1588 = vmul.f32 %v1571, %v1579
    %v1589 = vmul.f32 %v1573, %v1584
    %v1590 = vxor.u32 %v1544, 2147483648
    %v1591 = vxor.u32 %v1545, 2147483648
    %v1592 = vxor.u32 %v1546, 2147483648
    %v1593 = vxor.u32 %v1547, 2147483648
    %v1594 = vmul.f32 %v1590, 1.442695
    %v1595 = vpow.pop %v1594
    %v1596 = vmul.f32 %v1591, 1.442695
    %v1597 = vpow.pop %v1596
    %v1598 = vmul.f32 %v1592, 1.442695
    %v1599 = vpow.pop %v1598
    %v1600 = vmul.f32 %v1593, 1.442695
    %v1601 = vpow.pop %v1600
    %v1602 = vadd.f32 %v1595, 1.0
    %v1603 = vadd.f32 %v1597, 1.0
    %v1604 = vadd.f32 %v1599, 1.0
    %v1605 = vadd.f32 %v1601, 1.0
    %v1606 = vrcp.pop %v1602
    %v1607 = vmul.f32 %v1602, %v1606
    %v1608 = vsub.f32 1.0, %v1607
    %v1609 = vmul.f32 %v1606, %v1608
    %v1610 = vadd.f32 %v1606, %v1609
    %vm1611 = vweird.f32 %v1602
    %vm1612 = vweird.f32 %v1606
    %vm1613 = vmor %vm1611, %vm1612
    %v1614 = vsel %vm1613, %v1606, %v1610
    %v1615 = vand.u32 2147483647, %v1602
    %vm1616 = vcmp.eq.f32.partialorder %v1615, 8.507059e+37
    %v1617 = vand.u32 %v1602, 2147483648
    %v1618 = vor.u32 1.1754944e-38, %v1617
    %v1619 = vsel %vm1616, %v1618, %v1614
    %v1620 = vmul.f32 1.0, %v1619
    %v1621 = vrcp.pop %v1603
    %v1622 = vmul.f32 %v1603, %v1621
    %v1623 = vsub.f32 1.0, %v1622
    %v1624 = vmul.f32 %v1621, %v1623
    %v1625 = vadd.f32 %v1621, %v1624
    %vm1626 = vweird.f32 %v1603
    %vm1627 = vweird.f32 %v1621
    %vm1628 = vmor %vm1626, %vm1627
    %v1629 = vsel %vm1628, %v1621, %v1625
    %v1630 = vand.u32 2147483647, %v1603
    %vm1631 = vcmp.eq.f32.partialorder %v1630, 8.507059e+37
    %v1632 = vand.u32 %v1603, 2147483648
    %v1633 = vor.u32 1.1754944e-38, %v1632
    %v1634 = vsel %vm1631, %v1633, %v1629
    %v1635 = vmul.f32 1.0, %v1634
    %v1636 = vrcp.pop %v1604
    %v1637 = vmul.f32 %v1604, %v1636
    %v1638 = vsub.f32 1.0, %v1637
    %v1639 = vmul.f32 %v1636, %v1638
    %v1640 = vadd.f32 %v1636, %v1639
    %vm1641 = vweird.f32 %v1604
    %vm1642 = vweird.f32 %v1636
    %vm1643 = vmor %vm1641, %vm1642
    %v1644 = vsel %vm1643, %v1636, %v1640
    %v1645 = vand.u32 2147483647, %v1604
    %vm1646 = vcmp.eq.f32.partialorder %v1645, 8.507059e+37
    %v1647 = vand.u32 %v1604, 2147483648
    %v1648 = vor.u32 1.1754944e-38, %v1647
    %v1649 = vsel %vm1646, %v1648, %v1644
    %v1650 = vmul.f32 1.0, %v1649
    %v1651 = vrcp.pop %v1605
    %v1652 = vmul.f32 %v1605, %v1651
    %v1653 = vsub.f32 1.0, %v1652
    %v1654 = vmul.f32 %v1651, %v1653
    %v1655 = vadd.f32 %v1651, %v1654
    %vm1656 = vweird.f32 %v1605
    %vm1657 = vweird.f32 %v1651
    %vm1658 = vmor %vm1656, %vm1657
    %v1659 = vsel %vm1658, %v1651, %v1655
    %v1660 = vand.u32 2147483647, %v1605
    %vm1661 = vcmp.eq.f32.partialorder %v1660, 8.507059e+37
    %v1662 = vand.u32 %v1605, 2147483648
    %v1663 = vor.u32 1.1754944e-38, %v1662
    %v1664 = vsel %vm1661, %v1663, %v1659
    %v1665 = vmul.f32 1.0, %v1664
    %v1666 = vsel %vm1560, %v1586, %v1620
    %v1667 = vsel %vm1561, %v1587, %v1635
    %v1668 = vsel %vm1560, %v1588, %v1650
    %v1669 = vsel %vm1561, %v1589, %v1665
    %1670 = vst.msk [vmem:[%s7] sm:$0xff] %vm749, %v1666
    %1671 = vst.msk [vmem:[%s7 + $0x8] sm:$0x7f] %vm1440, %v1667
    %1672 = vst.msk [vmem:[%s7 + $0x10] sm:$0xff] %vm749, %v1668
    %1673 = vst.msk [vmem:[%s7 + $0x18] sm:$0x7f] %vm1440, %v1669
    %vm1674 = vcmask 400391
    %v1675 = vsel %vm1674, %v1432, 0.0
    %1676 = vadd.xlane.f32.xlu0 %v1675
    %v1677 = vpop.xlane.xlu0 %1676
    %v1678 = vsel %vm752, %v1433, 0.0
    %1679 = vadd.xlane.f32.xlu0 %v1678
    %v1680 = vpop.xlane.xlu0 %1679
    %v1681 = vsel %vm1674, %v1435, 0.0
    %1682 = vadd.xlane.f32.xlu0 %v1681
    %v1683 = vpop.xlane.xlu0 %1682
    %v1684 = vsel %vm752, %v1436, 0.0
    %1685 = vadd.xlane.f32.xlu0 %v1684
    %v1686 = vpop.xlane.xlu0 %1685
    %v1687 = vrcp.pop 49.0
    %v1688 = vmul.f32 49.0, %v1687
    %v1689 = vsub.f32 1.0, %v1688
    %v1690 = vmul.f32 %v1687, %v1689
    %v1691 = vadd.f32 %v1687, %v1690
    %vm1692 = vweird.f32 %v1687
    %v1693 = vsel %vm1692, %v1687, %v1691
    %v1694 = vmul.f32 %v1677, %v1693
    %v1695 = vmul.f32 %v1680, %v1693
    %v1696 = vmul.f32 %v1683, %v1693
    %v1697 = vmul.f32 %v1686, %v1693
    %v1698 = vld [vmem:[%s2] sm:$0x1]
    %v1700 = vperm.slane %v1698, 0
    %v1701 = vlaneseq
    %v1702 = vshrl.u32 %v1701, 7
    %v1703 = vadd.s32 %v1702, 4294967289
    %1704 = vset.pattern.permute.xlu0 %v1703
    %1705 = vperm.xlu0 %1704, %v1700
    %v1706 = vpop.permute.xlu0 %1705
    %v1707 = vlaneseq
    %v1708 = vshrl.u32 %v1707, 7
    %v1709 = vadd.s32 %v1708, 1
    %1710 = vset.pattern.permute.xlu0 %v1709
    %1711 = vperm.xlu0 %1710, %v1700
    %v1712 = vpop.permute.xlu0 %1711
    %v1715 = vadd.f32 %v1694, %v1706
    %v1716 = vadd.f32 %v1695, %v1712
    %v1717 = vadd.f32 %v1696, %v1706
    %v1718 = vadd.f32 %v1697, %v1712
    %1723 = vset.pattern.permute.xlu0 0
    %1724 = vperm.xlu0 %1723, %v1715
    %v1725 = vpop.permute.xlu0 %1724
    %1726 = vset.pattern.permute.xlu0 0
    %1727 = vperm.xlu0 %1726, %v1716
    %v1728 = vpop.permute.xlu0 %1727
    %1729 = vset.pattern.permute.xlu0 0
    %1730 = vperm.xlu0 %1729, %v1717
    %v1731 = vpop.permute.xlu0 %1730
    %1732 = vset.pattern.permute.xlu0 0
    %1733 = vperm.xlu0 %1732, %v1718
    %v1734 = vpop.permute.xlu0 %1733
    %v1735 = vlaneseq
    %v1736 = vand.u32 %v1735, 127
    %v1737 = vadd.s32 %v1736, 7
    %v1738 = vperm.slane %v1725, %v1737
    %v1739 = vadd.s32 %v1736, 4294967295
    %v1740 = vperm.slane %v1728, %v1739
    %vm1741 = vcmask 72712
    %v1742 = vsel %vm1741, %v1740, %v1738
    %v1743 = vperm.slane %v1731, %v1737
    %v1744 = vperm.slane %v1734, %v1739
    %v1745 = vsel %vm1741, %v1744, %v1743
    %vm1748 = vcmask 15367
    %1749 = vst.msk [vmem:[#allocation3 - $0x7] sm:$0x80] %vm1748, %v1742
    %vm1750 = vcmask 8192
    %1751 = vst.msk [vmem:[#allocation3 + $0x1] sm:$0x1] %vm1750, %v1745
    // Predicated region
    $region30: #{best_detector_forward.1} parent=1 // pred_check
      _
    $region31: #{best_detector_forward.1} parent=1 // pred_check_branch
      %1753 = sbr.rel (0) target = $region33
    $region32: #{best_detector_forward.1} parent=1 // pred_region
      _
    $region33: #{best_detector_forward.1} parent=1 // pred_fallthru
      _
    // Predicated region
    $region34: #{best_detector_forward.1} parent=1 // pred_check
      _
    $region35: #{best_detector_forward.1} parent=1 // pred_check_branch
      %1755 = sbr.rel (0) target = $region37
    $region36: #{best_detector_forward.1} parent=1 // pred_region
      %1757 = vsyncadd [#allocation4], 0
      %s1759 = sshll.u32 [#allocation3], 4
      %s1760 = int_to_ptr.vmem [resolvable:$true] %s1759
      %s1761 = sshll.u32 %s8, 4
      %s1762 = int_to_ptr.hbm [resolvable:$true] %s1761
      %1764 = dma.vmem_to_hbm [thread:$0]  %s1760, 32, %s1762, [#allocation4]
    $region37: #{best_detector_forward.1} parent=1 // pred_fallthru
      _
    // Predicated region
    $region38: #{best_detector_forward.1} parent=1 // pred_check
      _
    $region39: #{best_detector_forward.1} parent=1 // pred_check_branch
      %1766 = sbr.rel (0) target = $region41
    $region40: #{best_detector_forward.1} parent=1 // pred_region
      _
    $region41: #{best_detector_forward.1} parent=1 // pred_fallthru
      _
    // Predicated region
    $region42: #{best_detector_forward.1} parent=1 // pred_check
      _
    $region43: #{best_detector_forward.1} parent=1 // pred_check_branch
      %1768 = sbr.rel (0) target = $region45
    $region44: #{best_detector_forward.1} parent=1 // pred_region
      %1770 = dma.done [#allocation4], 32
    $region45: #{best_detector_forward.1} parent=1 // pred_fallthru
      _
    %1771 = vsyncpa [#allocation4], 1

</llo_original>
